<compile_context>
chip_gen: v7x
topology: tpu7x:2x2x1
jax: 0.10.0
libtpu: 0.0.40
codegen_flags: <defaults>
</compile_context>

<pallas_src>
import functools

import jax
import jax.numpy as jnp
from jax.experimental import pallas as pl
from jax.experimental.pallas import tpu as pltpu


def _conv1x1_relu(x, w, b):
    """1x1 conv + ReLU as VPU broadcast-FMAs.

    x: (Cin, L), w: (Cout, Cin), b: (Cout, 1) -> (Cout, L)
    """
    cout, cin = w.shape
    L = x.shape[1]
    acc = jnp.broadcast_to(b, (cout, L))          # hoisted bias broadcast
    for ci in range(cin):
        acc = acc + w[:, ci:ci + 1] * x[ci:ci + 1, :]
    return jnp.maximum(acc, 0.0)


def _shifted_tap(x, m_ref, tp, s, L):
    """One 3x3 tap: lane-roll + pre-broadcast 0/1 validity mask (no broadcasts)."""
    if s == 0:
        return x                                   # center tap, no mask needed
    C = x.shape[0]
    return pltpu.roll(x, (-s) % L, axis=1) * m_ref[tp, :C, :]


def _conv3x3_relu_vpu(x, w_ref, b_ref, m_ref, *, W):
    """3x3 'same' conv + ReLU on the VPU — used when Cin is tiny / unaligned.

    x: (C, L); w_ref: (Cout, 9*C) f32 with row-block order (kh*3+kw)*C + ci.
    """
    C, L = x.shape
    cout = w_ref.shape[0]
    acc = jnp.broadcast_to(b_ref[...], (cout, L))
    for kh in range(3):
        for kw in range(3):
            tp = kh * 3 + kw
            s = (kh - 1) * W + (kw - 1)
            xt = _shifted_tap(x, m_ref, tp, s, L)
            for ci in range(C):
                k = tp * C + ci
                acc = acc + w_ref[:, k:k + 1] * xt[ci:ci + 1, :]
    return jnp.maximum(acc, 0.0)


def _conv3x3_relu_mxu(x, w_ref, b_ref, m_ref, pat_ref, *, W):
    """3x3 'same' conv + ReLU: stream im2col taps into VMEM scratch (one tap
    live at a time, 8-row aligned stores), then one bf16 MXU matmul (f32 acc).

    x: (C, L) with C % 8 == 0; w_ref: (Cout, 9*C) bf16; pat_ref: (>=9*C, L) f32.
    """
    C, L = x.shape
    for kh in range(3):
        for kw in range(3):
            tp = kh * 3 + kw
            s = (kh - 1) * W + (kw - 1)
            pat_ref[tp * C:(tp + 1) * C, :] = _shifted_tap(x, m_ref, tp, s, L)
    p = pat_ref[:9 * C, :].astype(jnp.bfloat16)
    y = jnp.dot(w_ref[...], p, preferred_element_type=jnp.float32) + b_ref[...]
    return jnp.maximum(y, 0.0)


def fire_kernel(x_ref, m_ref, w1_ref, b1_ref, w2_ref, b2_ref,
                w3_ref, b3_ref, w4_ref, b4_ref, o_ref, pat_ref,
                *, W, conv3_on_mxu):
    x = x_ref[...]                                           # (Cin, Nb*HW) f32

    # conv1 (1x1) + ReLU, conv2 (1x1) + ReLU : VPU broadcast-FMAs (no MXU).
    t = _conv1x1_relu(x, w1_ref[...], b1_ref[...])           # (S1, L)
    t = _conv1x1_relu(t, w2_ref[...], b2_ref[...])           # (E1, L)

    # conv3 (3x3, pad=1) + ReLU.
    if conv3_on_mxu:
        t = _conv3x3_relu_mxu(t, w3_ref, b3_ref, m_ref, pat_ref, W=W)
    else:
        t = _conv3x3_relu_vpu(t, w3_ref, b3_ref, m_ref, W=W)  # (E3, L)

    # conv4 (3x3, pad=1) + ReLU : scratch-streamed im2col + one bf16 matmul.
    t = _conv3x3_relu_mxu(t, w4_ref, b4_ref, m_ref, pat_ref, W=W)  # (E3, L)

    o_ref[...] = t


def fire_forward(x_nchw, params, *, batch_block=None):
    """Fire forward. Input/output NCHW; params are PyTorch-shaped conv tensors."""
    w1, b1, w2, b2, w3, b3, w4, b4 = params
    N, Cin, H, W = x_nchw.shape
    S1 = w1.shape[0]
    E1 = w2.shape[0]
    E3 = w3.shape[0]
    HW = H * W

    if w3.shape[1] != E1:
        raise ValueError("Fire forward requires e1x1 == conv3 input channels")
    if E3 % 8 != 0:
        raise ValueError("e3x3 must be a multiple of 8 (sublane alignment)")
    if HW % 128 != 0:
        raise ValueError("H*W must be a multiple of 128 for lane-dense stores")

    # ---- batch blocking: fold Nb images into the matmul's lane (N) dimension.
    # Heuristic keeps exactly 2 "parallel" grid steps when N is even so both
    # v7x TensorCores stay busy while maximizing per-step amortization.
    if batch_block is not None:
        Nb = batch_block
    elif N >= 2 and N % 2 == 0:
        Nb = N // 2
    else:
        Nb = 1
    if N % Nb != 0:
        raise ValueError("batch must be divisible by the batch block")
    L = Nb * HW

    conv3_on_mxu = (E1 % 8 == 0)      # aligned scratch writes, zero dead K

    # ---- host-side parameter repacking (tiny, one-time) ----
    w1m = w1.reshape(S1, Cin).astype(jnp.float32)
    b1m = b1.reshape(S1, 1).astype(jnp.float32)
    w2m = w2.reshape(E1, S1).astype(jnp.float32)
    b2m = b2.reshape(E1, 1).astype(jnp.float32)
    # 3x3 weights -> (Cout, 9*Cin), row-block order (kh*3 + kw)*Cin + ci.
    w3m = jnp.transpose(w3, (0, 2, 3, 1)).reshape(E3, 9 * E1)
    w3m = w3m.astype(jnp.bfloat16 if conv3_on_mxu else jnp.float32)
    b3m = b3.reshape(E3, 1).astype(jnp.float32)
    w4m = jnp.transpose(w4, (0, 2, 3, 1)).reshape(E3, 9 * E3).astype(jnp.bfloat16)
    b4m = b4.reshape(E3, 1).astype(jnp.float32)

    # Per-tap spatial validity masks, tiled across the Nb images of one block
    # and pre-broadcast across channels so the kernel never sublane-broadcasts.
    Cmax = max(E1, E3)
    ys = jnp.arange(H)[:, None]
    xs = jnp.arange(W)[None, :]
    taps = []
    for kh in range(3):
        for kw in range(3):
            dy, dx = kh - 1, kw - 1
            ok = ((ys + dy >= 0) & (ys + dy < H) & (xs + dx >= 0) & (xs + dx < W))
            taps.append(jnp.tile(ok.reshape(HW), (Nb,)).reshape(1, L))
    masks = jnp.concatenate(taps, axis=0).astype(jnp.float32)         # (9, L)
    masks = jnp.broadcast_to(masks[:, None, :], (9, Cmax, L))          # (9, Cmax, L)

    # Channel-major activations: (Cin, N*HW); batch folds into the lane axis.
    x2 = jnp.transpose(x_nchw, (1, 0, 2, 3)).reshape(Cin, N * HW).astype(jnp.float32)

    def full(arr):
        nd = arr.ndim
        return pl.BlockSpec(arr.shape, lambda i, _nd=nd: (0,) * _nd)

    consts = (masks, w1m, b1m, w2m, b2m, w3m, b3m, w4m, b4m)
    flops = 2 * N * HW * (S1 * Cin + E1 * S1 + 9 * E1 * E3 + 9 * E3 * E3)
    bytes_accessed = (int(x2.size) * 4 + N * E3 * HW * 4
                      + sum(int(a.size) * a.dtype.itemsize for a in consts))

    pat_rows = 9 * (max(E1, E3) if conv3_on_mxu else E3)
    kernel = functools.partial(fire_kernel, W=W, conv3_on_mxu=conv3_on_mxu)

    out2 = pl.pallas_call(
        kernel,
        out_shape=jax.ShapeDtypeStruct((E3, N * HW), jnp.float32),
        grid_spec=pltpu.PrefetchScalarGridSpec(
            num_scalar_prefetch=0,
            grid=(N // Nb,),
            in_specs=[
                pl.BlockSpec((Cin, L), lambda i: (0, i)),
                full(masks),
                full(w1m), full(b1m), full(w2m), full(b2m),
                full(w3m), full(b3m), full(w4m), full(b4m),
            ],
            out_specs=pl.BlockSpec((E3, L), lambda i: (0, i)),
            scratch_shapes=[pltpu.VMEM((pat_rows, L), jnp.float32)],
        ),
        compiler_params=pltpu.CompilerParams(
            dimension_semantics=("parallel",)),
        cost_estimate=pl.CostEstimate(
            flops=flops, transcendentals=0, bytes_accessed=bytes_accessed),
    )(x2, masks, w1m, b1m, w2m, b2m, w3m, b3m, w4m, b4m)

    return jnp.transpose(out2.reshape(E3, N, H, W), (1, 0, 2, 3))


# --------------------------- pure-JAX reference ---------------------------
def ref_fire(x, params):
    w1, b1, w2, b2, w3, b3, w4, b4 = params

    def conv(x, w, b, pad):
        y = jax.lax.conv_general_dilated(
            x, w, (1, 1), ((pad, pad), (pad, pad)),
            dimension_numbers=('NCHW', 'OIHW', 'NCHW'),
            precision=jax.lax.Precision.HIGHEST)
        return jax.nn.relu(y + b.reshape(1, -1, 1, 1))

    x = conv(x, w1, b1, 0)
    x = conv(x, w2, b2, 0)
    x = conv(x, w3, b3, 1)
    x = conv(x, w4, b4, 1)
    return x


if __name__ == "__main__":
    N, Cin, H, W = 2, 4, 16, 16
    s1x1, e1x1, e3x3 = 8, 4, 8   # e1x1 must equal Cin for the module's forward chain

    key = jax.random.PRNGKey(0)
    ks = jax.random.split(key, 9)

    def u(k, shape, fan_in):
        lim = 1.0 / (fan_in ** 0.5)
        return jax.random.uniform(k, shape, jnp.float32, -lim, lim)

    # PyTorch-shaped parameters: (Cout, Cin, kh, kw) weights, (Cout,) biases.
    w1 = u(ks[0], (s1x1, Cin, 1, 1), Cin)
    b1 = u(ks[1], (s1x1,), Cin)
    w2 = u(ks[2], (e1x1, s1x1, 1, 1), s1x1)
    b2 = u(ks[3], (e1x1,), s1x1)
    w3 = u(ks[4], (e3x3, Cin, 3, 3), Cin * 9)
    b3 = u(ks[5], (e3x3,), Cin * 9)
    w4 = u(ks[6], (e3x3, e3x3, 3, 3), e3x3 * 9)
    b4 = u(ks[7], (e3x3,), e3x3 * 9)
    params = (w1, b1, w2, b2, w3, b3, w4, b4)

    x = jax.random.normal(ks[8], (N, Cin, H, W), jnp.float32)

    out = jax.block_until_ready(fire_forward(x, params))
    ref = jax.block_until_ready(ref_fire(x, params))

    assert out.shape == ref.shape == (N, e3x3, H, W)
    # Tolerance accounts for bf16 MXU operands (f32 accumulation) in the 3x3 convs.
    max_err = float(jnp.max(jnp.abs(out - ref)))
    assert max_err < 3e-3, f"max abs err {max_err}"
    print("KERNEL_OK")
</pallas_src>

<mosaic_0001>
module attributes {stable_mosaic.version = 11 : i64} {
  func.func @fire_kernel(%arg0: i32, %arg1: memref<4x256xf32, #tpu.memory_space<vmem>>, %arg2: memref<9x8x256xf32, #tpu.memory_space<vmem>>, %arg3: memref<8x4xf32, #tpu.memory_space<vmem>>, %arg4: memref<8x1xf32, #tpu.memory_space<vmem>>, %arg5: memref<4x8xf32, #tpu.memory_space<vmem>>, %arg6: memref<4x1xf32, #tpu.memory_space<vmem>>, %arg7: memref<8x36xf32, #tpu.memory_space<vmem>>, %arg8: memref<8x1xf32, #tpu.memory_space<vmem>>, %arg9: memref<8x72xbf16, #tpu.memory_space<vmem>>, %arg10: memref<8x1xf32, #tpu.memory_space<vmem>>, %arg11: memref<8x256xf32, #tpu.memory_space<vmem>>, %arg12: memref<72x256xf32, #tpu.memory_space<vmem>>) attributes {dimension_semantics = [#tpu.dimension_semantics<parallel>], iteration_bounds = array<i64: 2>, scalar_prefetch = 0 : i64, scratch_operands = 1 : i64, tpu.core_type = #tpu.core_type<tc>, window_params = [{transform_indices = @transform_0, window_bounds = array<i64: 4, 256>}, {pipeline_mode = #tpu.pipeline_mode<synchronous>, transform_indices = @transform_1, window_bounds = array<i64: 9, 8, 256>}, {pipeline_mode = #tpu.pipeline_mode<synchronous>, transform_indices = @transform_2, window_bounds = array<i64: 8, 4>}, {pipeline_mode = #tpu.pipeline_mode<synchronous>, transform_indices = @transform_3, window_bounds = array<i64: 8, 1>}, {pipeline_mode = #tpu.pipeline_mode<synchronous>, transform_indices = @transform_4, window_bounds = array<i64: 4, 8>}, {pipeline_mode = #tpu.pipeline_mode<synchronous>, transform_indices = @transform_5, window_bounds = array<i64: 4, 1>}, {pipeline_mode = #tpu.pipeline_mode<synchronous>, transform_indices = @transform_6, window_bounds = array<i64: 8, 36>}, {pipeline_mode = #tpu.pipeline_mode<synchronous>, transform_indices = @transform_7, window_bounds = array<i64: 8, 1>}, {pipeline_mode = #tpu.pipeline_mode<synchronous>, transform_indices = @transform_8, window_bounds = array<i64: 8, 72>}, {pipeline_mode = #tpu.pipeline_mode<synchronous>, transform_indices = @transform_9, window_bounds = array<i64: 8, 1>}, {transform_indices = @transform_10, window_bounds = array<i64: 8, 256>}]} {
    %c0 = arith.constant 0 : index
    %c0_0 = arith.constant 0 : index
    %0 = vector.load %arg1[%c0, %c0_0] : memref<4x256xf32, #tpu.memory_space<vmem>>, vector<4x256xf32>
    %c0_1 = arith.constant 0 : index
    %c0_2 = arith.constant 0 : index
    %1 = vector.load %arg3[%c0_1, %c0_2] : memref<8x4xf32, #tpu.memory_space<vmem>>, vector<8x4xf32>
    %c0_3 = arith.constant 0 : index
    %c0_4 = arith.constant 0 : index
    %2 = vector.load %arg4[%c0_3, %c0_4] : memref<8x1xf32, #tpu.memory_space<vmem>>, vector<8x1xf32>
    %3 = vector.shape_cast %2 : vector<8x1xf32> to vector<8x1xf32>
    %4 = vector.broadcast %3 : vector<8x1xf32> to vector<8x256xf32>
    %5 = vector.extract_strided_slice %1 {offsets = [0, 0], sizes = [8, 1], strides = [1, 1]} : vector<8x4xf32> to vector<8x1xf32>
    %6 = vector.extract_strided_slice %0 {offsets = [0, 0], sizes = [1, 256], strides = [1, 1]} : vector<4x256xf32> to vector<1x256xf32>
    %7 = vector.broadcast %5 : vector<8x1xf32> to vector<8x256xf32>
    %8 = vector.broadcast %6 : vector<1x256xf32> to vector<8x256xf32>
    %9 = arith.mulf %7, %8 : vector<8x256xf32>
    %10 = arith.addf %4, %9 : vector<8x256xf32>
    %11 = vector.extract_strided_slice %1 {offsets = [0, 1], sizes = [8, 1], strides = [1, 1]} : vector<8x4xf32> to vector<8x1xf32>
    %12 = vector.extract_strided_slice %0 {offsets = [1, 0], sizes = [1, 256], strides = [1, 1]} : vector<4x256xf32> to vector<1x256xf32>
    %13 = vector.broadcast %11 : vector<8x1xf32> to vector<8x256xf32>
    %14 = vector.broadcast %12 : vector<1x256xf32> to vector<8x256xf32>
    %15 = arith.mulf %13, %14 : vector<8x256xf32>
    %16 = arith.addf %10, %15 : vector<8x256xf32>
    %17 = vector.extract_strided_slice %1 {offsets = [0, 2], sizes = [8, 1], strides = [1, 1]} : vector<8x4xf32> to vector<8x1xf32>
    %18 = vector.extract_strided_slice %0 {offsets = [2, 0], sizes = [1, 256], strides = [1, 1]} : vector<4x256xf32> to vector<1x256xf32>
    %19 = vector.broadcast %17 : vector<8x1xf32> to vector<8x256xf32>
    %20 = vector.broadcast %18 : vector<1x256xf32> to vector<8x256xf32>
    %21 = arith.mulf %19, %20 : vector<8x256xf32>
    %22 = arith.addf %16, %21 : vector<8x256xf32>
    %23 = vector.extract_strided_slice %1 {offsets = [0, 3], sizes = [8, 1], strides = [1, 1]} : vector<8x4xf32> to vector<8x1xf32>
    %24 = vector.extract_strided_slice %0 {offsets = [3, 0], sizes = [1, 256], strides = [1, 1]} : vector<4x256xf32> to vector<1x256xf32>
    %25 = vector.broadcast %23 : vector<8x1xf32> to vector<8x256xf32>
    %26 = vector.broadcast %24 : vector<1x256xf32> to vector<8x256xf32>
    %27 = arith.mulf %25, %26 : vector<8x256xf32>
    %28 = arith.addf %22, %27 : vector<8x256xf32>
    %cst = arith.constant 0.000000e+00 : f32
    %29 = vector.broadcast %cst : f32 to vector<8x256xf32>
    %30 = arith.maximumf %28, %29 : vector<8x256xf32>
    %c0_5 = arith.constant 0 : index
    %c0_6 = arith.constant 0 : index
    %31 = vector.load %arg5[%c0_5, %c0_6] : memref<4x8xf32, #tpu.memory_space<vmem>>, vector<4x8xf32>
    %c0_7 = arith.constant 0 : index
    %c0_8 = arith.constant 0 : index
    %32 = vector.load %arg6[%c0_7, %c0_8] : memref<4x1xf32, #tpu.memory_space<vmem>>, vector<4x1xf32>
    %33 = vector.shape_cast %32 : vector<4x1xf32> to vector<4x1xf32>
    %34 = vector.broadcast %33 : vector<4x1xf32> to vector<4x256xf32>
    %35 = vector.extract_strided_slice %31 {offsets = [0, 0], sizes = [4, 1], strides = [1, 1]} : vector<4x8xf32> to vector<4x1xf32>
    %36 = vector.extract_strided_slice %30 {offsets = [0, 0], sizes = [1, 256], strides = [1, 1]} : vector<8x256xf32> to vector<1x256xf32>
    %37 = vector.broadcast %35 : vector<4x1xf32> to vector<4x256xf32>
    %38 = vector.broadcast %36 : vector<1x256xf32> to vector<4x256xf32>
    %39 = arith.mulf %37, %38 : vector<4x256xf32>
    %40 = arith.addf %34, %39 : vector<4x256xf32>
    %41 = vector.extract_strided_slice %31 {offsets = [0, 1], sizes = [4, 1], strides = [1, 1]} : vector<4x8xf32> to vector<4x1xf32>
    %42 = vector.extract_strided_slice %30 {offsets = [1, 0], sizes = [1, 256], strides = [1, 1]} : vector<8x256xf32> to vector<1x256xf32>
    %43 = vector.broadcast %41 : vector<4x1xf32> to vector<4x256xf32>
    %44 = vector.broadcast %42 : vector<1x256xf32> to vector<4x256xf32>
    %45 = arith.mulf %43, %44 : vector<4x256xf32>
    %46 = arith.addf %40, %45 : vector<4x256xf32>
    %47 = vector.extract_strided_slice %31 {offsets = [0, 2], sizes = [4, 1], strides = [1, 1]} : vector<4x8xf32> to vector<4x1xf32>
    %48 = vector.extract_strided_slice %30 {offsets = [2, 0], sizes = [1, 256], strides = [1, 1]} : vector<8x256xf32> to vector<1x256xf32>
    %49 = vector.broadcast %47 : vector<4x1xf32> to vector<4x256xf32>
    %50 = vector.broadcast %48 : vector<1x256xf32> to vector<4x256xf32>
    %51 = arith.mulf %49, %50 : vector<4x256xf32>
    %52 = arith.addf %46, %51 : vector<4x256xf32>
    %53 = vector.extract_strided_slice %31 {offsets = [0, 3], sizes = [4, 1], strides = [1, 1]} : vector<4x8xf32> to vector<4x1xf32>
    %54 = vector.extract_strided_slice %30 {offsets = [3, 0], sizes = [1, 256], strides = [1, 1]} : vector<8x256xf32> to vector<1x256xf32>
    %55 = vector.broadcast %53 : vector<4x1xf32> to vector<4x256xf32>
    %56 = vector.broadcast %54 : vector<1x256xf32> to vector<4x256xf32>
    %57 = arith.mulf %55, %56 : vector<4x256xf32>
    %58 = arith.addf %52, %57 : vector<4x256xf32>
    %59 = vector.extract_strided_slice %31 {offsets = [0, 4], sizes = [4, 1], strides = [1, 1]} : vector<4x8xf32> to vector<4x1xf32>
    %60 = vector.extract_strided_slice %30 {offsets = [4, 0], sizes = [1, 256], strides = [1, 1]} : vector<8x256xf32> to vector<1x256xf32>
    %61 = vector.broadcast %59 : vector<4x1xf32> to vector<4x256xf32>
    %62 = vector.broadcast %60 : vector<1x256xf32> to vector<4x256xf32>
    %63 = arith.mulf %61, %62 : vector<4x256xf32>
    %64 = arith.addf %58, %63 : vector<4x256xf32>
    %65 = vector.extract_strided_slice %31 {offsets = [0, 5], sizes = [4, 1], strides = [1, 1]} : vector<4x8xf32> to vector<4x1xf32>
    %66 = vector.extract_strided_slice %30 {offsets = [5, 0], sizes = [1, 256], strides = [1, 1]} : vector<8x256xf32> to vector<1x256xf32>
    %67 = vector.broadcast %65 : vector<4x1xf32> to vector<4x256xf32>
    %68 = vector.broadcast %66 : vector<1x256xf32> to vector<4x256xf32>
    %69 = arith.mulf %67, %68 : vector<4x256xf32>
    %70 = arith.addf %64, %69 : vector<4x256xf32>
    %71 = vector.extract_strided_slice %31 {offsets = [0, 6], sizes = [4, 1], strides = [1, 1]} : vector<4x8xf32> to vector<4x1xf32>
    %72 = vector.extract_strided_slice %30 {offsets = [6, 0], sizes = [1, 256], strides = [1, 1]} : vector<8x256xf32> to vector<1x256xf32>
    %73 = vector.broadcast %71 : vector<4x1xf32> to vector<4x256xf32>
    %74 = vector.broadcast %72 : vector<1x256xf32> to vector<4x256xf32>
    %75 = arith.mulf %73, %74 : vector<4x256xf32>
    %76 = arith.addf %70, %75 : vector<4x256xf32>
    %77 = vector.extract_strided_slice %31 {offsets = [0, 7], sizes = [4, 1], strides = [1, 1]} : vector<4x8xf32> to vector<4x1xf32>
    %78 = vector.extract_strided_slice %30 {offsets = [7, 0], sizes = [1, 256], strides = [1, 1]} : vector<8x256xf32> to vector<1x256xf32>
    %79 = vector.broadcast %77 : vector<4x1xf32> to vector<4x256xf32>
    %80 = vector.broadcast %78 : vector<1x256xf32> to vector<4x256xf32>
    %81 = arith.mulf %79, %80 : vector<4x256xf32>
    %82 = arith.addf %76, %81 : vector<4x256xf32>
    %cst_9 = arith.constant 0.000000e+00 : f32
    %83 = vector.broadcast %cst_9 : f32 to vector<4x256xf32>
    %84 = arith.maximumf %82, %83 : vector<4x256xf32>
    %c0_10 = arith.constant 0 : index
    %c0_11 = arith.constant 0 : index
    %85 = vector.load %arg8[%c0_10, %c0_11] : memref<8x1xf32, #tpu.memory_space<vmem>>, vector<8x1xf32>
    %86 = vector.shape_cast %85 : vector<8x1xf32> to vector<8x1xf32>
    %87 = vector.broadcast %86 : vector<8x1xf32> to vector<8x256xf32>
    %c17_i32 = arith.constant 17 : i32
    %88 = tpu.dynamic_rotate %84 by %c17_i32 dim 1 : vector<4x256xf32>, i32 -> vector<4x256xf32>
    %c0_12 = arith.constant 0 : index
    %c0_13 = arith.constant 0 : index
    %c0_14 = arith.constant 0 : index
    %89 = vector.load %arg2[%c0_12, %c0_13, %c0_14] : memref<9x8x256xf32, #tpu.memory_space<vmem>>, vector<1x4x256xf32>
    %90 = vector.shape_cast %89 : vector<1x4x256xf32> to vector<4x256xf32>
    %91 = arith.mulf %88, %90 : vector<4x256xf32>
    %c0_15 = arith.constant 0 : index
    %c0_16 = arith.constant 0 : index
    %92 = vector.load %arg7[%c0_15, %c0_16] : memref<8x36xf32, #tpu.memory_space<vmem>>, vector<8x1xf32>
    %93 = vector.extract_strided_slice %91 {offsets = [0, 0], sizes = [1, 256], strides = [1, 1]} : vector<4x256xf32> to vector<1x256xf32>
    %94 = vector.broadcast %92 : vector<8x1xf32> to vector<8x256xf32>
    %95 = vector.broadcast %93 : vector<1x256xf32> to vector<8x256xf32>
    %96 = arith.mulf %94, %95 : vector<8x256xf32>
    %97 = arith.addf %87, %96 : vector<8x256xf32>
    %c0_17 = arith.constant 0 : index
    %c1 = arith.constant 1 : index
    %98 = vector.load %arg7[%c0_17, %c1] : memref<8x36xf32, #tpu.memory_space<vmem>>, vector<8x1xf32>
    %99 = vector.extract_strided_slice %91 {offsets = [1, 0], sizes = [1, 256], strides = [1, 1]} : vector<4x256xf32> to vector<1x256xf32>
    %100 = vector.broadcast %98 : vector<8x1xf32> to vector<8x256xf32>
    %101 = vector.broadcast %99 : vector<1x256xf32> to vector<8x256xf32>
    %102 = arith.mulf %100, %101 : vector<8x256xf32>
    %103 = arith.addf %97, %102 : vector<8x256xf32>
    %c0_18 = arith.constant 0 : index
    %c2 = arith.constant 2 : index
    %104 = vector.load %arg7[%c0_18, %c2] : memref<8x36xf32, #tpu.memory_space<vmem>>, vector<8x1xf32>
    %105 = vector.extract_strided_slice %91 {offsets = [2, 0], sizes = [1, 256], strides = [1, 1]} : vector<4x256xf32> to vector<1x256xf32>
    %106 = vector.broadcast %104 : vector<8x1xf32> to vector<8x256xf32>
    %107 = vector.broadcast %105 : vector<1x256xf32> to vector<8x256xf32>
    %108 = arith.mulf %106, %107 : vector<8x256xf32>
    %109 = arith.addf %103, %108 : vector<8x256xf32>
    %c0_19 = arith.constant 0 : index
    %c3 = arith.constant 3 : index
    %110 = vector.load %arg7[%c0_19, %c3] : memref<8x36xf32, #tpu.memory_space<vmem>>, vector<8x1xf32>
    %111 = vector.extract_strided_slice %91 {offsets = [3, 0], sizes = [1, 256], strides = [1, 1]} : vector<4x256xf32> to vector<1x256xf32>
    %112 = vector.broadcast %110 : vector<8x1xf32> to vector<8x256xf32>
    %113 = vector.broadcast %111 : vector<1x256xf32> to vector<8x256xf32>
    %114 = arith.mulf %112, %113 : vector<8x256xf32>
    %115 = arith.addf %109, %114 : vector<8x256xf32>
    %c16_i32 = arith.constant 16 : i32
    %116 = tpu.dynamic_rotate %84 by %c16_i32 dim 1 : vector<4x256xf32>, i32 -> vector<4x256xf32>
    %c1_20 = arith.constant 1 : index
    %c0_21 = arith.constant 0 : index
    %c0_22 = arith.constant 0 : index
    %117 = vector.load %arg2[%c1_20, %c0_21, %c0_22] : memref<9x8x256xf32, #tpu.memory_space<vmem>>, vector<1x4x256xf32>
    %118 = vector.shape_cast %117 : vector<1x4x256xf32> to vector<4x256xf32>
    %119 = arith.mulf %116, %118 : vector<4x256xf32>
    %c0_23 = arith.constant 0 : index
    %c4 = arith.constant 4 : index
    %120 = vector.load %arg7[%c0_23, %c4] : memref<8x36xf32, #tpu.memory_space<vmem>>, vector<8x1xf32>
    %121 = vector.extract_strided_slice %119 {offsets = [0, 0], sizes = [1, 256], strides = [1, 1]} : vector<4x256xf32> to vector<1x256xf32>
    %122 = vector.broadcast %120 : vector<8x1xf32> to vector<8x256xf32>
    %123 = vector.broadcast %121 : vector<1x256xf32> to vector<8x256xf32>
    %124 = arith.mulf %122, %123 : vector<8x256xf32>
    %125 = arith.addf %115, %124 : vector<8x256xf32>
    %c0_24 = arith.constant 0 : index
    %c5 = arith.constant 5 : index
    %126 = vector.load %arg7[%c0_24, %c5] : memref<8x36xf32, #tpu.memory_space<vmem>>, vector<8x1xf32>
    %127 = vector.extract_strided_slice %119 {offsets = [1, 0], sizes = [1, 256], strides = [1, 1]} : vector<4x256xf32> to vector<1x256xf32>
    %128 = vector.broadcast %126 : vector<8x1xf32> to vector<8x256xf32>
    %129 = vector.broadcast %127 : vector<1x256xf32> to vector<8x256xf32>
    %130 = arith.mulf %128, %129 : vector<8x256xf32>
    %131 = arith.addf %125, %130 : vector<8x256xf32>
    %c0_25 = arith.constant 0 : index
    %c6 = arith.constant 6 : index
    %132 = vector.load %arg7[%c0_25, %c6] : memref<8x36xf32, #tpu.memory_space<vmem>>, vector<8x1xf32>
    %133 = vector.extract_strided_slice %119 {offsets = [2, 0], sizes = [1, 256], strides = [1, 1]} : vector<4x256xf32> to vector<1x256xf32>
    %134 = vector.broadcast %132 : vector<8x1xf32> to vector<8x256xf32>
    %135 = vector.broadcast %133 : vector<1x256xf32> to vector<8x256xf32>
    %136 = arith.mulf %134, %135 : vector<8x256xf32>
    %137 = arith.addf %131, %136 : vector<8x256xf32>
    %c0_26 = arith.constant 0 : index
    %c7 = arith.constant 7 : index
    %138 = vector.load %arg7[%c0_26, %c7] : memref<8x36xf32, #tpu.memory_space<vmem>>, vector<8x1xf32>
    %139 = vector.extract_strided_slice %119 {offsets = [3, 0], sizes = [1, 256], strides = [1, 1]} : vector<4x256xf32> to vector<1x256xf32>
    %140 = vector.broadcast %138 : vector<8x1xf32> to vector<8x256xf32>
    %141 = vector.broadcast %139 : vector<1x256xf32> to vector<8x256xf32>
    %142 = arith.mulf %140, %141 : vector<8x256xf32>
    %143 = arith.addf %137, %142 : vector<8x256xf32>
    %c15_i32 = arith.constant 15 : i32
    %144 = tpu.dynamic_rotate %84 by %c15_i32 dim 1 : vector<4x256xf32>, i32 -> vector<4x256xf32>
    %c2_27 = arith.constant 2 : index
    %c0_28 = arith.constant 0 : index
    %c0_29 = arith.constant 0 : index
    %145 = vector.load %arg2[%c2_27, %c0_28, %c0_29] : memref<9x8x256xf32, #tpu.memory_space<vmem>>, vector<1x4x256xf32>
    %146 = vector.shape_cast %145 : vector<1x4x256xf32> to vector<4x256xf32>
    %147 = arith.mulf %144, %146 : vector<4x256xf32>
    %c0_30 = arith.constant 0 : index
    %c8 = arith.constant 8 : index
    %148 = vector.load %arg7[%c0_30, %c8] : memref<8x36xf32, #tpu.memory_space<vmem>>, vector<8x1xf32>
    %149 = vector.extract_strided_slice %147 {offsets = [0, 0], sizes = [1, 256], strides = [1, 1]} : vector<4x256xf32> to vector<1x256xf32>
    %150 = vector.broadcast %148 : vector<8x1xf32> to vector<8x256xf32>
    %151 = vector.broadcast %149 : vector<1x256xf32> to vector<8x256xf32>
    %152 = arith.mulf %150, %151 : vector<8x256xf32>
    %153 = arith.addf %143, %152 : vector<8x256xf32>
    %c0_31 = arith.constant 0 : index
    %c9 = arith.constant 9 : index
    %154 = vector.load %arg7[%c0_31, %c9] : memref<8x36xf32, #tpu.memory_space<vmem>>, vector<8x1xf32>
    %155 = vector.extract_strided_slice %147 {offsets = [1, 0], sizes = [1, 256], strides = [1, 1]} : vector<4x256xf32> to vector<1x256xf32>
    %156 = vector.broadcast %154 : vector<8x1xf32> to vector<8x256xf32>
    %157 = vector.broadcast %155 : vector<1x256xf32> to vector<8x256xf32>
    %158 = arith.mulf %156, %157 : vector<8x256xf32>
    %159 = arith.addf %153, %158 : vector<8x256xf32>
    %c0_32 = arith.constant 0 : index
    %c10 = arith.constant 10 : index
    %160 = vector.load %arg7[%c0_32, %c10] : memref<8x36xf32, #tpu.memory_space<vmem>>, vector<8x1xf32>
    %161 = vector.extract_strided_slice %147 {offsets = [2, 0], sizes = [1, 256], strides = [1, 1]} : vector<4x256xf32> to vector<1x256xf32>
    %162 = vector.broadcast %160 : vector<8x1xf32> to vector<8x256xf32>
    %163 = vector.broadcast %161 : vector<1x256xf32> to vector<8x256xf32>
    %164 = arith.mulf %162, %163 : vector<8x256xf32>
    %165 = arith.addf %159, %164 : vector<8x256xf32>
    %c0_33 = arith.constant 0 : index
    %c11 = arith.constant 11 : index
    %166 = vector.load %arg7[%c0_33, %c11] : memref<8x36xf32, #tpu.memory_space<vmem>>, vector<8x1xf32>
    %167 = vector.extract_strided_slice %147 {offsets = [3, 0], sizes = [1, 256], strides = [1, 1]} : vector<4x256xf32> to vector<1x256xf32>
    %168 = vector.broadcast %166 : vector<8x1xf32> to vector<8x256xf32>
    %169 = vector.broadcast %167 : vector<1x256xf32> to vector<8x256xf32>
    %170 = arith.mulf %168, %169 : vector<8x256xf32>
    %171 = arith.addf %165, %170 : vector<8x256xf32>
    %c1_i32 = arith.constant 1 : i32
    %172 = tpu.dynamic_rotate %84 by %c1_i32 dim 1 : vector<4x256xf32>, i32 -> vector<4x256xf32>
    %c3_34 = arith.constant 3 : index
    %c0_35 = arith.constant 0 : index
    %c0_36 = arith.constant 0 : index
    %173 = vector.load %arg2[%c3_34, %c0_35, %c0_36] : memref<9x8x256xf32, #tpu.memory_space<vmem>>, vector<1x4x256xf32>
    %174 = vector.shape_cast %173 : vector<1x4x256xf32> to vector<4x256xf32>
    %175 = arith.mulf %172, %174 : vector<4x256xf32>
    %c0_37 = arith.constant 0 : index
    %c12 = arith.constant 12 : index
    %176 = vector.load %arg7[%c0_37, %c12] : memref<8x36xf32, #tpu.memory_space<vmem>>, vector<8x1xf32>
    %177 = vector.extract_strided_slice %175 {offsets = [0, 0], sizes = [1, 256], strides = [1, 1]} : vector<4x256xf32> to vector<1x256xf32>
    %178 = vector.broadcast %176 : vector<8x1xf32> to vector<8x256xf32>
    %179 = vector.broadcast %177 : vector<1x256xf32> to vector<8x256xf32>
    %180 = arith.mulf %178, %179 : vector<8x256xf32>
    %181 = arith.addf %171, %180 : vector<8x256xf32>
    %c0_38 = arith.constant 0 : index
    %c13 = arith.constant 13 : index
    %182 = vector.load %arg7[%c0_38, %c13] : memref<8x36xf32, #tpu.memory_space<vmem>>, vector<8x1xf32>
    %183 = vector.extract_strided_slice %175 {offsets = [1, 0], sizes = [1, 256], strides = [1, 1]} : vector<4x256xf32> to vector<1x256xf32>
    %184 = vector.broadcast %182 : vector<8x1xf32> to vector<8x256xf32>
    %185 = vector.broadcast %183 : vector<1x256xf32> to vector<8x256xf32>
    %186 = arith.mulf %184, %185 : vector<8x256xf32>
    %187 = arith.addf %181, %186 : vector<8x256xf32>
    %c0_39 = arith.constant 0 : index
    %c14 = arith.constant 14 : index
    %188 = vector.load %arg7[%c0_39, %c14] : memref<8x36xf32, #tpu.memory_space<vmem>>, vector<8x1xf32>
    %189 = vector.extract_strided_slice %175 {offsets = [2, 0], sizes = [1, 256], strides = [1, 1]} : vector<4x256xf32> to vector<1x256xf32>
    %190 = vector.broadcast %188 : vector<8x1xf32> to vector<8x256xf32>
    %191 = vector.broadcast %189 : vector<1x256xf32> to vector<8x256xf32>
    %192 = arith.mulf %190, %191 : vector<8x256xf32>
    %193 = arith.addf %187, %192 : vector<8x256xf32>
    %c0_40 = arith.constant 0 : index
    %c15 = arith.constant 15 : index
    %194 = vector.load %arg7[%c0_40, %c15] : memref<8x36xf32, #tpu.memory_space<vmem>>, vector<8x1xf32>
    %195 = vector.extract_strided_slice %175 {offsets = [3, 0], sizes = [1, 256], strides = [1, 1]} : vector<4x256xf32> to vector<1x256xf32>
    %196 = vector.broadcast %194 : vector<8x1xf32> to vector<8x256xf32>
    %197 = vector.broadcast %195 : vector<1x256xf32> to vector<8x256xf32>
    %198 = arith.mulf %196, %197 : vector<8x256xf32>
    %199 = arith.addf %193, %198 : vector<8x256xf32>
    %c0_41 = arith.constant 0 : index
    %c16 = arith.constant 16 : index
    %200 = vector.load %arg7[%c0_41, %c16] : memref<8x36xf32, #tpu.memory_space<vmem>>, vector<8x1xf32>
    %201 = vector.extract_strided_slice %84 {offsets = [0, 0], sizes = [1, 256], strides = [1, 1]} : vector<4x256xf32> to vector<1x256xf32>
    %202 = vector.broadcast %200 : vector<8x1xf32> to vector<8x256xf32>
    %203 = vector.broadcast %201 : vector<1x256xf32> to vector<8x256xf32>
    %204 = arith.mulf %202, %203 : vector<8x256xf32>
    %205 = arith.addf %199, %204 : vector<8x256xf32>
    %c0_42 = arith.constant 0 : index
    %c17 = arith.constant 17 : index
    %206 = vector.load %arg7[%c0_42, %c17] : memref<8x36xf32, #tpu.memory_space<vmem>>, vector<8x1xf32>
    %207 = vector.extract_strided_slice %84 {offsets = [1, 0], sizes = [1, 256], strides = [1, 1]} : vector<4x256xf32> to vector<1x256xf32>
    %208 = vector.broadcast %206 : vector<8x1xf32> to vector<8x256xf32>
    %209 = vector.broadcast %207 : vector<1x256xf32> to vector<8x256xf32>
    %210 = arith.mulf %208, %209 : vector<8x256xf32>
    %211 = arith.addf %205, %210 : vector<8x256xf32>
    %c0_43 = arith.constant 0 : index
    %c18 = arith.constant 18 : index
    %212 = vector.load %arg7[%c0_43, %c18] : memref<8x36xf32, #tpu.memory_space<vmem>>, vector<8x1xf32>
    %213 = vector.extract_strided_slice %84 {offsets = [2, 0], sizes = [1, 256], strides = [1, 1]} : vector<4x256xf32> to vector<1x256xf32>
    %214 = vector.broadcast %212 : vector<8x1xf32> to vector<8x256xf32>
    %215 = vector.broadcast %213 : vector<1x256xf32> to vector<8x256xf32>
    %216 = arith.mulf %214, %215 : vector<8x256xf32>
    %217 = arith.addf %211, %216 : vector<8x256xf32>
    %c0_44 = arith.constant 0 : index
    %c19 = arith.constant 19 : index
    %218 = vector.load %arg7[%c0_44, %c19] : memref<8x36xf32, #tpu.memory_space<vmem>>, vector<8x1xf32>
    %219 = vector.extract_strided_slice %84 {offsets = [3, 0], sizes = [1, 256], strides = [1, 1]} : vector<4x256xf32> to vector<1x256xf32>
    %220 = vector.broadcast %218 : vector<8x1xf32> to vector<8x256xf32>
    %221 = vector.broadcast %219 : vector<1x256xf32> to vector<8x256xf32>
    %222 = arith.mulf %220, %221 : vector<8x256xf32>
    %223 = arith.addf %217, %222 : vector<8x256xf32>
    %c255_i32 = arith.constant 255 : i32
    %224 = tpu.dynamic_rotate %84 by %c255_i32 dim 1 : vector<4x256xf32>, i32 -> vector<4x256xf32>
    %c5_45 = arith.constant 5 : index
    %c0_46 = arith.constant 0 : index
    %c0_47 = arith.constant 0 : index
    %225 = vector.load %arg2[%c5_45, %c0_46, %c0_47] : memref<9x8x256xf32, #tpu.memory_space<vmem>>, vector<1x4x256xf32>
    %226 = vector.shape_cast %225 : vector<1x4x256xf32> to vector<4x256xf32>
    %227 = arith.mulf %224, %226 : vector<4x256xf32>
    %c0_48 = arith.constant 0 : index
    %c20 = arith.constant 20 : index
    %228 = vector.load %arg7[%c0_48, %c20] : memref<8x36xf32, #tpu.memory_space<vmem>>, vector<8x1xf32>
    %229 = vector.extract_strided_slice %227 {offsets = [0, 0], sizes = [1, 256], strides = [1, 1]} : vector<4x256xf32> to vector<1x256xf32>
    %230 = vector.broadcast %228 : vector<8x1xf32> to vector<8x256xf32>
    %231 = vector.broadcast %229 : vector<1x256xf32> to vector<8x256xf32>
    %232 = arith.mulf %230, %231 : vector<8x256xf32>
    %233 = arith.addf %223, %232 : vector<8x256xf32>
    %c0_49 = arith.constant 0 : index
    %c21 = arith.constant 21 : index
    %234 = vector.load %arg7[%c0_49, %c21] : memref<8x36xf32, #tpu.memory_space<vmem>>, vector<8x1xf32>
    %235 = vector.extract_strided_slice %227 {offsets = [1, 0], sizes = [1, 256], strides = [1, 1]} : vector<4x256xf32> to vector<1x256xf32>
    %236 = vector.broadcast %234 : vector<8x1xf32> to vector<8x256xf32>
    %237 = vector.broadcast %235 : vector<1x256xf32> to vector<8x256xf32>
    %238 = arith.mulf %236, %237 : vector<8x256xf32>
    %239 = arith.addf %233, %238 : vector<8x256xf32>
    %c0_50 = arith.constant 0 : index
    %c22 = arith.constant 22 : index
    %240 = vector.load %arg7[%c0_50, %c22] : memref<8x36xf32, #tpu.memory_space<vmem>>, vector<8x1xf32>
    %241 = vector.extract_strided_slice %227 {offsets = [2, 0], sizes = [1, 256], strides = [1, 1]} : vector<4x256xf32> to vector<1x256xf32>
    %242 = vector.broadcast %240 : vector<8x1xf32> to vector<8x256xf32>
    %243 = vector.broadcast %241 : vector<1x256xf32> to vector<8x256xf32>
    %244 = arith.mulf %242, %243 : vector<8x256xf32>
    %245 = arith.addf %239, %244 : vector<8x256xf32>
    %c0_51 = arith.constant 0 : index
    %c23 = arith.constant 23 : index
    %246 = vector.load %arg7[%c0_51, %c23] : memref<8x36xf32, #tpu.memory_space<vmem>>, vector<8x1xf32>
    %247 = vector.extract_strided_slice %227 {offsets = [3, 0], sizes = [1, 256], strides = [1, 1]} : vector<4x256xf32> to vector<1x256xf32>
    %248 = vector.broadcast %246 : vector<8x1xf32> to vector<8x256xf32>
    %249 = vector.broadcast %247 : vector<1x256xf32> to vector<8x256xf32>
    %250 = arith.mulf %248, %249 : vector<8x256xf32>
    %251 = arith.addf %245, %250 : vector<8x256xf32>
    %c241_i32 = arith.constant 241 : i32
    %252 = tpu.dynamic_rotate %84 by %c241_i32 dim 1 : vector<4x256xf32>, i32 -> vector<4x256xf32>
    %c6_52 = arith.constant 6 : index
    %c0_53 = arith.constant 0 : index
    %c0_54 = arith.constant 0 : index
    %253 = vector.load %arg2[%c6_52, %c0_53, %c0_54] : memref<9x8x256xf32, #tpu.memory_space<vmem>>, vector<1x4x256xf32>
    %254 = vector.shape_cast %253 : vector<1x4x256xf32> to vector<4x256xf32>
    %255 = arith.mulf %252, %254 : vector<4x256xf32>
    %c0_55 = arith.constant 0 : index
    %c24 = arith.constant 24 : index
    %256 = vector.load %arg7[%c0_55, %c24] : memref<8x36xf32, #tpu.memory_space<vmem>>, vector<8x1xf32>
    %257 = vector.extract_strided_slice %255 {offsets = [0, 0], sizes = [1, 256], strides = [1, 1]} : vector<4x256xf32> to vector<1x256xf32>
    %258 = vector.broadcast %256 : vector<8x1xf32> to vector<8x256xf32>
    %259 = vector.broadcast %257 : vector<1x256xf32> to vector<8x256xf32>
    %260 = arith.mulf %258, %259 : vector<8x256xf32>
    %261 = arith.addf %251, %260 : vector<8x256xf32>
    %c0_56 = arith.constant 0 : index
    %c25 = arith.constant 25 : index
    %262 = vector.load %arg7[%c0_56, %c25] : memref<8x36xf32, #tpu.memory_space<vmem>>, vector<8x1xf32>
    %263 = vector.extract_strided_slice %255 {offsets = [1, 0], sizes = [1, 256], strides = [1, 1]} : vector<4x256xf32> to vector<1x256xf32>
    %264 = vector.broadcast %262 : vector<8x1xf32> to vector<8x256xf32>
    %265 = vector.broadcast %263 : vector<1x256xf32> to vector<8x256xf32>
    %266 = arith.mulf %264, %265 : vector<8x256xf32>
    %267 = arith.addf %261, %266 : vector<8x256xf32>
    %c0_57 = arith.constant 0 : index
    %c26 = arith.constant 26 : index
    %268 = vector.load %arg7[%c0_57, %c26] : memref<8x36xf32, #tpu.memory_space<vmem>>, vector<8x1xf32>
    %269 = vector.extract_strided_slice %255 {offsets = [2, 0], sizes = [1, 256], strides = [1, 1]} : vector<4x256xf32> to vector<1x256xf32>
    %270 = vector.broadcast %268 : vector<8x1xf32> to vector<8x256xf32>
    %271 = vector.broadcast %269 : vector<1x256xf32> to vector<8x256xf32>
    %272 = arith.mulf %270, %271 : vector<8x256xf32>
    %273 = arith.addf %267, %272 : vector<8x256xf32>
    %c0_58 = arith.constant 0 : index
    %c27 = arith.constant 27 : index
    %274 = vector.load %arg7[%c0_58, %c27] : memref<8x36xf32, #tpu.memory_space<vmem>>, vector<8x1xf32>
    %275 = vector.extract_strided_slice %255 {offsets = [3, 0], sizes = [1, 256], strides = [1, 1]} : vector<4x256xf32> to vector<1x256xf32>
    %276 = vector.broadcast %274 : vector<8x1xf32> to vector<8x256xf32>
    %277 = vector.broadcast %275 : vector<1x256xf32> to vector<8x256xf32>
    %278 = arith.mulf %276, %277 : vector<8x256xf32>
    %279 = arith.addf %273, %278 : vector<8x256xf32>
    %c240_i32 = arith.constant 240 : i32
    %280 = tpu.dynamic_rotate %84 by %c240_i32 dim 1 : vector<4x256xf32>, i32 -> vector<4x256xf32>
    %c7_59 = arith.constant 7 : index
    %c0_60 = arith.constant 0 : index
    %c0_61 = arith.constant 0 : index
    %281 = vector.load %arg2[%c7_59, %c0_60, %c0_61] : memref<9x8x256xf32, #tpu.memory_space<vmem>>, vector<1x4x256xf32>
    %282 = vector.shape_cast %281 : vector<1x4x256xf32> to vector<4x256xf32>
    %283 = arith.mulf %280, %282 : vector<4x256xf32>
    %c0_62 = arith.constant 0 : index
    %c28 = arith.constant 28 : index
    %284 = vector.load %arg7[%c0_62, %c28] : memref<8x36xf32, #tpu.memory_space<vmem>>, vector<8x1xf32>
    %285 = vector.extract_strided_slice %283 {offsets = [0, 0], sizes = [1, 256], strides = [1, 1]} : vector<4x256xf32> to vector<1x256xf32>
    %286 = vector.broadcast %284 : vector<8x1xf32> to vector<8x256xf32>
    %287 = vector.broadcast %285 : vector<1x256xf32> to vector<8x256xf32>
    %288 = arith.mulf %286, %287 : vector<8x256xf32>
    %289 = arith.addf %279, %288 : vector<8x256xf32>
    %c0_63 = arith.constant 0 : index
    %c29 = arith.constant 29 : index
    %290 = vector.load %arg7[%c0_63, %c29] : memref<8x36xf32, #tpu.memory_space<vmem>>, vector<8x1xf32>
    %291 = vector.extract_strided_slice %283 {offsets = [1, 0], sizes = [1, 256], strides = [1, 1]} : vector<4x256xf32> to vector<1x256xf32>
    %292 = vector.broadcast %290 : vector<8x1xf32> to vector<8x256xf32>
    %293 = vector.broadcast %291 : vector<1x256xf32> to vector<8x256xf32>
    %294 = arith.mulf %292, %293 : vector<8x256xf32>
    %295 = arith.addf %289, %294 : vector<8x256xf32>
    %c0_64 = arith.constant 0 : index
    %c30 = arith.constant 30 : index
    %296 = vector.load %arg7[%c0_64, %c30] : memref<8x36xf32, #tpu.memory_space<vmem>>, vector<8x1xf32>
    %297 = vector.extract_strided_slice %283 {offsets = [2, 0], sizes = [1, 256], strides = [1, 1]} : vector<4x256xf32> to vector<1x256xf32>
    %298 = vector.broadcast %296 : vector<8x1xf32> to vector<8x256xf32>
    %299 = vector.broadcast %297 : vector<1x256xf32> to vector<8x256xf32>
    %300 = arith.mulf %298, %299 : vector<8x256xf32>
    %301 = arith.addf %295, %300 : vector<8x256xf32>
    %c0_65 = arith.constant 0 : index
    %c31 = arith.constant 31 : index
    %302 = vector.load %arg7[%c0_65, %c31] : memref<8x36xf32, #tpu.memory_space<vmem>>, vector<8x1xf32>
    %303 = vector.extract_strided_slice %283 {offsets = [3, 0], sizes = [1, 256], strides = [1, 1]} : vector<4x256xf32> to vector<1x256xf32>
    %304 = vector.broadcast %302 : vector<8x1xf32> to vector<8x256xf32>
    %305 = vector.broadcast %303 : vector<1x256xf32> to vector<8x256xf32>
    %306 = arith.mulf %304, %305 : vector<8x256xf32>
    %307 = arith.addf %301, %306 : vector<8x256xf32>
    %c239_i32 = arith.constant 239 : i32
    %308 = tpu.dynamic_rotate %84 by %c239_i32 dim 1 : vector<4x256xf32>, i32 -> vector<4x256xf32>
    %c8_66 = arith.constant 8 : index
    %c0_67 = arith.constant 0 : index
    %c0_68 = arith.constant 0 : index
    %309 = vector.load %arg2[%c8_66, %c0_67, %c0_68] : memref<9x8x256xf32, #tpu.memory_space<vmem>>, vector<1x4x256xf32>
    %310 = vector.shape_cast %309 : vector<1x4x256xf32> to vector<4x256xf32>
    %311 = arith.mulf %308, %310 : vector<4x256xf32>
    %c0_69 = arith.constant 0 : index
    %c32 = arith.constant 32 : index
    %312 = vector.load %arg7[%c0_69, %c32] : memref<8x36xf32, #tpu.memory_space<vmem>>, vector<8x1xf32>
    %313 = vector.extract_strided_slice %311 {offsets = [0, 0], sizes = [1, 256], strides = [1, 1]} : vector<4x256xf32> to vector<1x256xf32>
    %314 = vector.broadcast %312 : vector<8x1xf32> to vector<8x256xf32>
    %315 = vector.broadcast %313 : vector<1x256xf32> to vector<8x256xf32>
    %316 = arith.mulf %314, %315 : vector<8x256xf32>
    %317 = arith.addf %307, %316 : vector<8x256xf32>
    %c0_70 = arith.constant 0 : index
    %c33 = arith.constant 33 : index
    %318 = vector.load %arg7[%c0_70, %c33] : memref<8x36xf32, #tpu.memory_space<vmem>>, vector<8x1xf32>
    %319 = vector.extract_strided_slice %311 {offsets = [1, 0], sizes = [1, 256], strides = [1, 1]} : vector<4x256xf32> to vector<1x256xf32>
    %320 = vector.broadcast %318 : vector<8x1xf32> to vector<8x256xf32>
    %321 = vector.broadcast %319 : vector<1x256xf32> to vector<8x256xf32>
    %322 = arith.mulf %320, %321 : vector<8x256xf32>
    %323 = arith.addf %317, %322 : vector<8x256xf32>
    %c0_71 = arith.constant 0 : index
    %c34 = arith.constant 34 : index
    %324 = vector.load %arg7[%c0_71, %c34] : memref<8x36xf32, #tpu.memory_space<vmem>>, vector<8x1xf32>
    %325 = vector.extract_strided_slice %311 {offsets = [2, 0], sizes = [1, 256], strides = [1, 1]} : vector<4x256xf32> to vector<1x256xf32>
    %326 = vector.broadcast %324 : vector<8x1xf32> to vector<8x256xf32>
    %327 = vector.broadcast %325 : vector<1x256xf32> to vector<8x256xf32>
    %328 = arith.mulf %326, %327 : vector<8x256xf32>
    %329 = arith.addf %323, %328 : vector<8x256xf32>
    %c0_72 = arith.constant 0 : index
    %c35 = arith.constant 35 : index
    %330 = vector.load %arg7[%c0_72, %c35] : memref<8x36xf32, #tpu.memory_space<vmem>>, vector<8x1xf32>
    %331 = vector.extract_strided_slice %311 {offsets = [3, 0], sizes = [1, 256], strides = [1, 1]} : vector<4x256xf32> to vector<1x256xf32>
    %332 = vector.broadcast %330 : vector<8x1xf32> to vector<8x256xf32>
    %333 = vector.broadcast %331 : vector<1x256xf32> to vector<8x256xf32>
    %334 = arith.mulf %332, %333 : vector<8x256xf32>
    %335 = arith.addf %329, %334 : vector<8x256xf32>
    %cst_73 = arith.constant 0.000000e+00 : f32
    %336 = vector.broadcast %cst_73 : f32 to vector<8x256xf32>
    %337 = arith.maximumf %335, %336 : vector<8x256xf32>
    %c17_i32_74 = arith.constant 17 : i32
    %338 = tpu.dynamic_rotate %337 by %c17_i32_74 dim 1 : vector<8x256xf32>, i32 -> vector<8x256xf32>
    %c0_75 = arith.constant 0 : index
    %c0_76 = arith.constant 0 : index
    %c0_77 = arith.constant 0 : index
    %339 = vector.load %arg2[%c0_75, %c0_76, %c0_77] : memref<9x8x256xf32, #tpu.memory_space<vmem>>, vector<1x8x256xf32>
    %340 = vector.shape_cast %339 : vector<1x8x256xf32> to vector<8x256xf32>
    %341 = arith.mulf %338, %340 : vector<8x256xf32>
    %c0_78 = arith.constant 0 : index
    %c0_79 = arith.constant 0 : index
    %342 = vector.load %arg12[%c0_78, %c0_79] : memref<72x256xf32, #tpu.memory_space<vmem>>, vector<8x256xf32>
    tpu.vector_store %arg12[%c0_78, %c0_79], %341 {strides = array<i32>} : memref<72x256xf32, #tpu.memory_space<vmem>>, vector<8x256xf32>,
    %c16_i32_80 = arith.constant 16 : i32
    %343 = tpu.dynamic_rotate %337 by %c16_i32_80 dim 1 : vector<8x256xf32>, i32 -> vector<8x256xf32>
    %c1_81 = arith.constant 1 : index
    %c0_82 = arith.constant 0 : index
    %c0_83 = arith.constant 0 : index
    %344 = vector.load %arg2[%c1_81, %c0_82, %c0_83] : memref<9x8x256xf32, #tpu.memory_space<vmem>>, vector<1x8x256xf32>
    %345 = vector.shape_cast %344 : vector<1x8x256xf32> to vector<8x256xf32>
    %346 = arith.mulf %343, %345 : vector<8x256xf32>
    %c8_84 = arith.constant 8 : index
    %c0_85 = arith.constant 0 : index
    %347 = vector.load %arg12[%c8_84, %c0_85] : memref<72x256xf32, #tpu.memory_space<vmem>>, vector<8x256xf32>
    tpu.vector_store %arg12[%c8_84, %c0_85], %346 {strides = array<i32>} : memref<72x256xf32, #tpu.memory_space<vmem>>, vector<8x256xf32>,
    %c15_i32_86 = arith.constant 15 : i32
    %348 = tpu.dynamic_rotate %337 by %c15_i32_86 dim 1 : vector<8x256xf32>, i32 -> vector<8x256xf32>
    %c2_87 = arith.constant 2 : index
    %c0_88 = arith.constant 0 : index
    %c0_89 = arith.constant 0 : index
    %349 = vector.load %arg2[%c2_87, %c0_88, %c0_89] : memref<9x8x256xf32, #tpu.memory_space<vmem>>, vector<1x8x256xf32>
    %350 = vector.shape_cast %349 : vector<1x8x256xf32> to vector<8x256xf32>
    %351 = arith.mulf %348, %350 : vector<8x256xf32>
    %c16_90 = arith.constant 16 : index
    %c0_91 = arith.constant 0 : index
    %352 = vector.load %arg12[%c16_90, %c0_91] : memref<72x256xf32, #tpu.memory_space<vmem>>, vector<8x256xf32>
    tpu.vector_store %arg12[%c16_90, %c0_91], %351 {strides = array<i32>} : memref<72x256xf32, #tpu.memory_space<vmem>>, vector<8x256xf32>,
    %c1_i32_92 = arith.constant 1 : i32
    %353 = tpu.dynamic_rotate %337 by %c1_i32_92 dim 1 : vector<8x256xf32>, i32 -> vector<8x256xf32>
    %c3_93 = arith.constant 3 : index
    %c0_94 = arith.constant 0 : index
    %c0_95 = arith.constant 0 : index
    %354 = vector.load %arg2[%c3_93, %c0_94, %c0_95] : memref<9x8x256xf32, #tpu.memory_space<vmem>>, vector<1x8x256xf32>
    %355 = vector.shape_cast %354 : vector<1x8x256xf32> to vector<8x256xf32>
    %356 = arith.mulf %353, %355 : vector<8x256xf32>
    %c24_96 = arith.constant 24 : index
    %c0_97 = arith.constant 0 : index
    %357 = vector.load %arg12[%c24_96, %c0_97] : memref<72x256xf32, #tpu.memory_space<vmem>>, vector<8x256xf32>
    tpu.vector_store %arg12[%c24_96, %c0_97], %356 {strides = array<i32>} : memref<72x256xf32, #tpu.memory_space<vmem>>, vector<8x256xf32>,
    %c32_98 = arith.constant 32 : index
    %c0_99 = arith.constant 0 : index
    %358 = vector.load %arg12[%c32_98, %c0_99] : memref<72x256xf32, #tpu.memory_space<vmem>>, vector<8x256xf32>
    tpu.vector_store %arg12[%c32_98, %c0_99], %337 {strides = array<i32>} : memref<72x256xf32, #tpu.memory_space<vmem>>, vector<8x256xf32>,
    %c255_i32_100 = arith.constant 255 : i32
    %359 = tpu.dynamic_rotate %337 by %c255_i32_100 dim 1 : vector<8x256xf32>, i32 -> vector<8x256xf32>
    %c5_101 = arith.constant 5 : index
    %c0_102 = arith.constant 0 : index
    %c0_103 = arith.constant 0 : index
    %360 = vector.load %arg2[%c5_101, %c0_102, %c0_103] : memref<9x8x256xf32, #tpu.memory_space<vmem>>, vector<1x8x256xf32>
    %361 = vector.shape_cast %360 : vector<1x8x256xf32> to vector<8x256xf32>
    %362 = arith.mulf %359, %361 : vector<8x256xf32>
    %c40 = arith.constant 40 : index
    %c0_104 = arith.constant 0 : index
    %363 = vector.load %arg12[%c40, %c0_104] : memref<72x256xf32, #tpu.memory_space<vmem>>, vector<8x256xf32>
    tpu.vector_store %arg12[%c40, %c0_104], %362 {strides = array<i32>} : memref<72x256xf32, #tpu.memory_space<vmem>>, vector<8x256xf32>,
    %c241_i32_105 = arith.constant 241 : i32
    %364 = tpu.dynamic_rotate %337 by %c241_i32_105 dim 1 : vector<8x256xf32>, i32 -> vector<8x256xf32>
    %c6_106 = arith.constant 6 : index
    %c0_107 = arith.constant 0 : index
    %c0_108 = arith.constant 0 : index
    %365 = vector.load %arg2[%c6_106, %c0_107, %c0_108] : memref<9x8x256xf32, #tpu.memory_space<vmem>>, vector<1x8x256xf32>
    %366 = vector.shape_cast %365 : vector<1x8x256xf32> to vector<8x256xf32>
    %367 = arith.mulf %364, %366 : vector<8x256xf32>
    %c48 = arith.constant 48 : index
    %c0_109 = arith.constant 0 : index
    %368 = vector.load %arg12[%c48, %c0_109] : memref<72x256xf32, #tpu.memory_space<vmem>>, vector<8x256xf32>
    tpu.vector_store %arg12[%c48, %c0_109], %367 {strides = array<i32>} : memref<72x256xf32, #tpu.memory_space<vmem>>, vector<8x256xf32>,
    %c240_i32_110 = arith.constant 240 : i32
    %369 = tpu.dynamic_rotate %337 by %c240_i32_110 dim 1 : vector<8x256xf32>, i32 -> vector<8x256xf32>
    %c7_111 = arith.constant 7 : index
    %c0_112 = arith.constant 0 : index
    %c0_113 = arith.constant 0 : index
    %370 = vector.load %arg2[%c7_111, %c0_112, %c0_113] : memref<9x8x256xf32, #tpu.memory_space<vmem>>, vector<1x8x256xf32>
    %371 = vector.shape_cast %370 : vector<1x8x256xf32> to vector<8x256xf32>
    %372 = arith.mulf %369, %371 : vector<8x256xf32>
    %c56 = arith.constant 56 : index
    %c0_114 = arith.constant 0 : index
    %373 = vector.load %arg12[%c56, %c0_114] : memref<72x256xf32, #tpu.memory_space<vmem>>, vector<8x256xf32>
    tpu.vector_store %arg12[%c56, %c0_114], %372 {strides = array<i32>} : memref<72x256xf32, #tpu.memory_space<vmem>>, vector<8x256xf32>,
    %c239_i32_115 = arith.constant 239 : i32
    %374 = tpu.dynamic_rotate %337 by %c239_i32_115 dim 1 : vector<8x256xf32>, i32 -> vector<8x256xf32>
    %c8_116 = arith.constant 8 : index
    %c0_117 = arith.constant 0 : index
    %c0_118 = arith.constant 0 : index
    %375 = vector.load %arg2[%c8_116, %c0_117, %c0_118] : memref<9x8x256xf32, #tpu.memory_space<vmem>>, vector<1x8x256xf32>
    %376 = vector.shape_cast %375 : vector<1x8x256xf32> to vector<8x256xf32>
    %377 = arith.mulf %374, %376 : vector<8x256xf32>
    %c64 = arith.constant 64 : index
    %c0_119 = arith.constant 0 : index
    %378 = vector.load %arg12[%c64, %c0_119] : memref<72x256xf32, #tpu.memory_space<vmem>>, vector<8x256xf32>
    tpu.vector_store %arg12[%c64, %c0_119], %377 {strides = array<i32>} : memref<72x256xf32, #tpu.memory_space<vmem>>, vector<8x256xf32>,
    %c0_120 = arith.constant 0 : index
    %c0_121 = arith.constant 0 : index
    %379 = vector.load %arg12[%c0_120, %c0_121] : memref<72x256xf32, #tpu.memory_space<vmem>>, vector<72x256xf32>
    %380 = arith.truncf %379 : vector<72x256xf32> to vector<72x256xbf16>
    %c0_122 = arith.constant 0 : index
    %c0_123 = arith.constant 0 : index
    %381 = vector.load %arg9[%c0_122, %c0_123] : memref<8x72xbf16, #tpu.memory_space<vmem>>, vector<8x72xbf16>
    %cst_124 = arith.constant dense<0.000000e+00> : vector<8x256xf32>
    %382 = tpu.matmul %381, %380, %cst_124 {dimension_numbers = #tpu.dot_dimension_numbers<[1], [0], [0], [1], [0, 0, 1, 1], [], []>} : vector<8x72xbf16>, vector<72x256xbf16>, vector<8x256xf32> -> vector<8x256xf32>
    %c0_125 = arith.constant 0 : index
    %c0_126 = arith.constant 0 : index
    %383 = vector.load %arg10[%c0_125, %c0_126] : memref<8x1xf32, #tpu.memory_space<vmem>>, vector<8x1xf32>
    %384 = vector.broadcast %383 : vector<8x1xf32> to vector<8x256xf32>
    %385 = arith.addf %382, %384 : vector<8x256xf32>
    %cst_127 = arith.constant 0.000000e+00 : f32
    %386 = vector.broadcast %cst_127 : f32 to vector<8x256xf32>
    %387 = arith.maximumf %385, %386 : vector<8x256xf32>
    %c0_128 = arith.constant 0 : index
    %c0_129 = arith.constant 0 : index
    %388 = vector.load %arg11[%c0_128, %c0_129] : memref<8x256xf32, #tpu.memory_space<vmem>>, vector<8x256xf32>
    tpu.vector_store %arg11[%c0_128, %c0_129], %387 {strides = array<i32>} : memref<8x256xf32, #tpu.memory_space<vmem>>, vector<8x256xf32>,
    return
  }
  func.func @transform_0(%arg0: i32) -> (i32, i32) {
    %c0_i32 = arith.constant 0 : i32
    %c0_i32_0 = arith.constant 0 : i32
    return %c0_i32, %arg0 : i32, i32
  }
  func.func @transform_1(%arg0: i32) -> (i32, i32, i32) {
    %c0_i32 = arith.constant 0 : i32
    %c0_i32_0 = arith.constant 0 : i32
    %c0_i32_1 = arith.constant 0 : i32
    %c0_i32_2 = arith.constant 0 : i32
    return %c0_i32, %c0_i32_0, %c0_i32_1 : i32, i32, i32
  }
  func.func @transform_2(%arg0: i32) -> (i32, i32) {
    %c0_i32 = arith.constant 0 : i32
    %c0_i32_0 = arith.constant 0 : i32
    %c0_i32_1 = arith.constant 0 : i32
    return %c0_i32, %c0_i32_0 : i32, i32
  }
  func.func @transform_3(%arg0: i32) -> (i32, i32) {
    %c0_i32 = arith.constant 0 : i32
    %c0_i32_0 = arith.constant 0 : i32
    %c0_i32_1 = arith.constant 0 : i32
    return %c0_i32, %c0_i32_0 : i32, i32
  }
  func.func @transform_4(%arg0: i32) -> (i32, i32) {
    %c0_i32 = arith.constant 0 : i32
    %c0_i32_0 = arith.constant 0 : i32
    %c0_i32_1 = arith.constant 0 : i32
    return %c0_i32, %c0_i32_0 : i32, i32
  }
  func.func @transform_5(%arg0: i32) -> (i32, i32) {
    %c0_i32 = arith.constant 0 : i32
    %c0_i32_0 = arith.constant 0 : i32
    %c0_i32_1 = arith.constant 0 : i32
    return %c0_i32, %c0_i32_0 : i32, i32
  }
  func.func @transform_6(%arg0: i32) -> (i32, i32) {
    %c0_i32 = arith.constant 0 : i32
    %c0_i32_0 = arith.constant 0 : i32
    %c0_i32_1 = arith.constant 0 : i32
    return %c0_i32, %c0_i32_0 : i32, i32
  }
  func.func @transform_7(%arg0: i32) -> (i32, i32) {
    %c0_i32 = arith.constant 0 : i32
    %c0_i32_0 = arith.constant 0 : i32
    %c0_i32_1 = arith.constant 0 : i32
    return %c0_i32, %c0_i32_0 : i32, i32
  }
  func.func @transform_8(%arg0: i32) -> (i32, i32) {
    %c0_i32 = arith.constant 0 : i32
    %c0_i32_0 = arith.constant 0 : i32
    %c0_i32_1 = arith.constant 0 : i32
    return %c0_i32, %c0_i32_0 : i32, i32
  }
  func.func @transform_9(%arg0: i32) -> (i32, i32) {
    %c0_i32 = arith.constant 0 : i32
    %c0_i32_0 = arith.constant 0 : i32
    %c0_i32_1 = arith.constant 0 : i32
    return %c0_i32, %c0_i32_0 : i32, i32
  }
  func.func @transform_10(%arg0: i32) -> (i32, i32) {
    %c0_i32 = arith.constant 0 : i32
    %c0_i32_0 = arith.constant 0 : i32
    return %c0_i32, %arg0 : i32, i32
  }
}

</mosaic_0001>

<llo_original>
// kernel: tpu_custom_call.1
$region0: #{tpu_custom_call.1}
  #allocation0 [shape = 'u32[]', space=smem, size = 0x4, offset = 0x4, fixed_abs, tag = 'smem constant byte address 0x4 - core index']
  #allocation1 [shape = 'u32[144,128]{1,0:T(1,128)}', space=vmem, size = 0x12000, scoped, tag = 'internal scratch']
  #allocation2 [shape = 'f32[72,256]{1,0:T(8,128)}', space=vmem, size = 0x12000, scoped, tag = 'scratch operand']
  %s0 = inlined_call_operand.vmem [shape: f32[4,512], index: 0, kind: input, shape index: {}]
  %s1 = inlined_call_operand.hbm [shape: f32[9,8,256], index: 1, kind: input, shape index: {}]
  %s2 = inlined_call_operand.vmem [shape: f32[8,4], index: 2, kind: input, shape index: {}]
  %s3 = inlined_call_operand.vmem [shape: f32[8,1], index: 3, kind: input, shape index: {}]
  %s4 = inlined_call_operand.vmem [shape: f32[4,8], index: 4, kind: input, shape index: {}]
  %s5 = inlined_call_operand.vmem [shape: f32[4,1], index: 5, kind: input, shape index: {}]
  %s6 = inlined_call_operand.vmem [shape: f32[8,36], index: 6, kind: input, shape index: {}]
  %s7 = inlined_call_operand.vmem [shape: f32[8,1], index: 7, kind: input, shape index: {}]
  %s8 = inlined_call_operand.vmem [shape: bf16[8,72], index: 8, kind: input, shape index: {}]
  %s9 = inlined_call_operand.vmem [shape: f32[8,1], index: 9, kind: input, shape index: {}]
  %s10 = inlined_call_operand.hbm [shape: f32[8,512], index: 10, kind: output, shape index: {}]
  %s11 = sld [smem:[#allocation0]]
  $region77: #{tpu_custom_call.1} parent=0
    _
  %s13 = ssub.s32 1, %s11
  %s14 = scalar_select 0, %s13, %s11
  $region1: #{tpu_custom_call.1} parent=0
    #allocation3 [shape = 'u8[73728]{0}', space=vmem, size = 0x12000, scoped, tag = 'input window, operand 1, single buffered']
    #allocation4 [shape = 's32[2]{0}', space=sflag, size = 0x8, scoped, tag = 'scoped memory for tpu_custom_call.1']
    #allocation5 [shape = 's32[2]{0}', space=sflag, size = 0x8, scoped, tag = 'scoped memory for tpu_custom_call.1']
    #allocation6 [shape = 'u8[16384]{0}', space=vmem, size = 0x4000, scoped, tag = 'output window, operand 0']
    %15 = vsyncpa [#allocation4], 0
    %16 = vsyncpa [#allocation5], 0
    %s17 = scalar_lea.sflag [#allocation5], 1
    %18 = vsyncpa %s17, 0
    loop: start=0, step=1, limit=4
    $region2: #{tpu_custom_call.1} parent=1 // loop_pre_header
      _
    $region3: #{tpu_custom_call.1} parent=1 // loop_header
      %s20 = sphi 0, %s24
      %p21 = scmp.ge.s32.totalorder %s20, 4
      %s30 = sphi 0, %s32
      %s33 = sphi 0, %s30
      %s34 = sphi 0, %s33
      %s50 = sphi 0, %s34
      %s54 = sphi 0, %s54
      %s56 = sphi 0, %s54
      %s57 = sphi 0, %s56
      %s71 = sphi 0, %s57
      %s75 = sphi 0, %s75
      %s77 = sphi 0, %s75
      %s78 = sphi 0, %s77
      %s92 = sphi 0, %s78
      %s96 = sphi 0, %s96
      %s98 = sphi 0, %s96
      %s99 = sphi 0, %s98
      %s113 = sphi 0, %s99
      %s117 = sphi 0, %s117
      %s119 = sphi 0, %s117
      %s120 = sphi 0, %s119
      %s134 = sphi 0, %s120
      %s138 = sphi 0, %s138
      %s140 = sphi 0, %s138
      %s141 = sphi 0, %s140
      %s155 = sphi 0, %s141
      %s159 = sphi 0, %s159
      %s161 = sphi 0, %s159
      %s162 = sphi 0, %s161
      %s176 = sphi 0, %s162
      %s180 = sphi 0, %s180
      %s182 = sphi 0, %s180
      %s183 = sphi 0, %s182
      %s197 = sphi 0, %s183
      %s201 = sphi 0, %s201
      %s203 = sphi 0, %s201
      %s204 = sphi 0, %s203
      %s218 = sphi 0, %s204
      %s222 = sphi 0, %s222
      %s224 = sphi 0, %s222
      %s225 = sphi 0, %s224
      %s239 = sphi 0, %s225
      %s245 = sphi 0, %s247
      %s248 = sphi 0, %s245
      %s249 = sphi 0, %s248
      %s265 = sphi 0, %s249
    $region4: #{tpu_custom_call.1} parent=1 // loop_header_branch
      %23 = sbr.rel (%p21) target = $region8
    $region5: #{tpu_custom_call.1} parent=1 // loop_body
      %s25 = ssub.s32 %s20, 1
      %s26 = ssub.s32 %s20, 2
      %s27 = sadd.s32 %s20, 1
      %s28 = ssub.s32 %s20, %s27
      %p29 = scmp.eq.s32.totalorder %s28, 0
      %s31 = sadd.s32 %s30, 1
      %s32 = scalar_select %p29, %s30, %s31
      %p35 = pneg %p29
      %p36 = scmp.eq.s32.totalorder %s20, 1
      %p37 = por %p35, %p36
      %p38 = scmp.ne.s32.totalorder %s30, %s33
      %p39 = scmp.eq.s32.totalorder %s20, 0
      %p40 = por %p38, %p39
      %p41 = scmp.ne.s32.totalorder %s30, %s33
      %p42 = scmp.eq.s32.totalorder %s25, 1
      %p43 = por %p41, %p42
      %p44 = scmp.ne.s32.totalorder %s33, %s34
      %p45 = scmp.eq.s32.totalorder %s25, 0
      %p46 = por %p44, %p45
      %p47 = scmp.ne.s32.totalorder %s33, %s34
      %p48 = scmp.eq.s32.totalorder %s26, 1
      %p49 = por %p47, %p48
      %p51 = scmp.ne.s32.totalorder %s34, %s50
      %p52 = scmp.eq.s32.totalorder %s26, 0
      %p53 = por %p51, %p52
      %s55 = sadd.s32 %s54, 1
      %p58 = scmp.eq.s32.totalorder %s20, 1
      %p59 = scmp.ne.s32.totalorder %s54, %s56
      %p60 = scmp.eq.s32.totalorder %s20, 0
      %p61 = por %p59, %p60
      %p62 = scmp.ne.s32.totalorder %s54, %s56
      %p63 = scmp.eq.s32.totalorder %s25, 1
      %p64 = por %p62, %p63
      %p65 = scmp.ne.s32.totalorder %s56, %s57
      %p66 = scmp.eq.s32.totalorder %s25, 0
      %p67 = por %p65, %p66
      %p68 = scmp.ne.s32.totalorder %s56, %s57
      %p69 = scmp.eq.s32.totalorder %s26, 1
      %p70 = por %p68, %p69
      %p72 = scmp.ne.s32.totalorder %s57, %s71
      %p73 = scmp.eq.s32.totalorder %s26, 0
      %p74 = por %p72, %p73
      %s76 = sadd.s32 %s75, 1
      %p79 = scmp.eq.s32.totalorder %s20, 1
      %p80 = scmp.ne.s32.totalorder %s75, %s77
      %p81 = scmp.eq.s32.totalorder %s20, 0
      %p82 = por %p80, %p81
      %p83 = scmp.ne.s32.totalorder %s75, %s77
      %p84 = scmp.eq.s32.totalorder %s25, 1
      %p85 = por %p83, %p84
      %p86 = scmp.ne.s32.totalorder %s77, %s78
      %p87 = scmp.eq.s32.totalorder %s25, 0
      %p88 = por %p86, %p87
      %p89 = scmp.ne.s32.totalorder %s77, %s78
      %p90 = scmp.eq.s32.totalorder %s26, 1
      %p91 = por %p89, %p90
      %p93 = scmp.ne.s32.totalorder %s78, %s92
      %p94 = scmp.eq.s32.totalorder %s26, 0
      %p95 = por %p93, %p94
      %s97 = sadd.s32 %s96, 1
      %p100 = scmp.eq.s32.totalorder %s20, 1
      %p101 = scmp.ne.s32.totalorder %s96, %s98
      %p102 = scmp.eq.s32.totalorder %s20, 0
      %p103 = por %p101, %p102
      %p104 = scmp.ne.s32.totalorder %s96, %s98
      %p105 = scmp.eq.s32.totalorder %s25, 1
      %p106 = por %p104, %p105
      %p107 = scmp.ne.s32.totalorder %s98, %s99
      %p108 = scmp.eq.s32.totalorder %s25, 0
      %p109 = por %p107, %p108
      %p110 = scmp.ne.s32.totalorder %s98, %s99
      %p111 = scmp.eq.s32.totalorder %s26, 1
      %p112 = por %p110, %p111
      %p114 = scmp.ne.s32.totalorder %s99, %s113
      %p115 = scmp.eq.s32.totalorder %s26, 0
      %p116 = por %p114, %p115
      %s118 = sadd.s32 %s117, 1
      %p121 = scmp.eq.s32.totalorder %s20, 1
      %p122 = scmp.ne.s32.totalorder %s117, %s119
      %p123 = scmp.eq.s32.totalorder %s20, 0
      %p124 = por %p122, %p123
      %p125 = scmp.ne.s32.totalorder %s117, %s119
      %p126 = scmp.eq.s32.totalorder %s25, 1
      %p127 = por %p125, %p126
      %p128 = scmp.ne.s32.totalorder %s119, %s120
      %p129 = scmp.eq.s32.totalorder %s25, 0
      %p130 = por %p128, %p129
      %p131 = scmp.ne.s32.totalorder %s119, %s120
      %p132 = scmp.eq.s32.totalorder %s26, 1
      %p133 = por %p131, %p132
      %p135 = scmp.ne.s32.totalorder %s120, %s134
      %p136 = scmp.eq.s32.totalorder %s26, 0
      %p137 = por %p135, %p136
      %s139 = sadd.s32 %s138, 1
      %p142 = scmp.eq.s32.totalorder %s20, 1
      %p143 = scmp.ne.s32.totalorder %s138, %s140
      %p144 = scmp.eq.s32.totalorder %s20, 0
      %p145 = por %p143, %p144
      %p146 = scmp.ne.s32.totalorder %s138, %s140
      %p147 = scmp.eq.s32.totalorder %s25, 1
      %p148 = por %p146, %p147
      %p149 = scmp.ne.s32.totalorder %s140, %s141
      %p150 = scmp.eq.s32.totalorder %s25, 0
      %p151 = por %p149, %p150
      %p152 = scmp.ne.s32.totalorder %s140, %s141
      %p153 = scmp.eq.s32.totalorder %s26, 1
      %p154 = por %p152, %p153
      %p156 = scmp.ne.s32.totalorder %s141, %s155
      %p157 = scmp.eq.s32.totalorder %s26, 0
      %p158 = por %p156, %p157
      %s160 = sadd.s32 %s159, 1
      %p163 = scmp.eq.s32.totalorder %s20, 1
      %p164 = scmp.ne.s32.totalorder %s159, %s161
      %p165 = scmp.eq.s32.totalorder %s20, 0
      %p166 = por %p164, %p165
      %p167 = scmp.ne.s32.totalorder %s159, %s161
      %p168 = scmp.eq.s32.totalorder %s25, 1
      %p169 = por %p167, %p168
      %p170 = scmp.ne.s32.totalorder %s161, %s162
      %p171 = scmp.eq.s32.totalorder %s25, 0
      %p172 = por %p170, %p171
      %p173 = scmp.ne.s32.totalorder %s161, %s162
      %p174 = scmp.eq.s32.totalorder %s26, 1
      %p175 = por %p173, %p174
      %p177 = scmp.ne.s32.totalorder %s162, %s176
      %p178 = scmp.eq.s32.totalorder %s26, 0
      %p179 = por %p177, %p178
      %s181 = sadd.s32 %s180, 1
      %p184 = scmp.eq.s32.totalorder %s20, 1
      %p185 = scmp.ne.s32.totalorder %s180, %s182
      %p186 = scmp.eq.s32.totalorder %s20, 0
      %p187 = por %p185, %p186
      %p188 = scmp.ne.s32.totalorder %s180, %s182
      %p189 = scmp.eq.s32.totalorder %s25, 1
      %p190 = por %p188, %p189
      %p191 = scmp.ne.s32.totalorder %s182, %s183
      %p192 = scmp.eq.s32.totalorder %s25, 0
      %p193 = por %p191, %p192
      %p194 = scmp.ne.s32.totalorder %s182, %s183
      %p195 = scmp.eq.s32.totalorder %s26, 1
      %p196 = por %p194, %p195
      %p198 = scmp.ne.s32.totalorder %s183, %s197
      %p199 = scmp.eq.s32.totalorder %s26, 0
      %p200 = por %p198, %p199
      %s202 = sadd.s32 %s201, 1
      %p205 = scmp.eq.s32.totalorder %s20, 1
      %p206 = scmp.ne.s32.totalorder %s201, %s203
      %p207 = scmp.eq.s32.totalorder %s20, 0
      %p208 = por %p206, %p207
      %p209 = scmp.ne.s32.totalorder %s201, %s203
      %p210 = scmp.eq.s32.totalorder %s25, 1
      %p211 = por %p209, %p210
      %p212 = scmp.ne.s32.totalorder %s203, %s204
      %p213 = scmp.eq.s32.totalorder %s25, 0
      %p214 = por %p212, %p213
      %p215 = scmp.ne.s32.totalorder %s203, %s204
      %p216 = scmp.eq.s32.totalorder %s26, 1
      %p217 = por %p215, %p216
      %p219 = scmp.ne.s32.totalorder %s204, %s218
      %p220 = scmp.eq.s32.totalorder %s26, 0
      %p221 = por %p219, %p220
      %s223 = sadd.s32 %s222, 1
      %p226 = scmp.eq.s32.totalorder %s20, 1
      %p227 = scmp.ne.s32.totalorder %s222, %s224
      %p228 = scmp.eq.s32.totalorder %s20, 0
      %p229 = por %p227, %p228
      %p230 = scmp.ne.s32.totalorder %s222, %s224
      %p231 = scmp.eq.s32.totalorder %s25, 1
      %p232 = por %p230, %p231
      %p233 = scmp.ne.s32.totalorder %s224, %s225
      %p234 = scmp.eq.s32.totalorder %s25, 0
      %p235 = por %p233, %p234
      %p236 = scmp.ne.s32.totalorder %s224, %s225
      %p237 = scmp.eq.s32.totalorder %s26, 1
      %p238 = por %p236, %p237
      %p240 = scmp.ne.s32.totalorder %s225, %s239
      %p241 = scmp.eq.s32.totalorder %s26, 0
      %p242 = por %p240, %p241
      %s243 = ssub.s32 %s20, %s27
      %p244 = scmp.eq.s32.totalorder %s243, 0
      %s246 = sadd.s32 %s245, 1
      %s247 = scalar_select %p244, %s245, %s246
      %p250 = pneg %p244
      %p251 = scmp.eq.s32.totalorder %s20, 1
      %p252 = por %p250, %p251
      %p253 = scmp.ne.s32.totalorder %s245, %s248
      %p254 = scmp.eq.s32.totalorder %s20, 0
      %p255 = por %p253, %p254
      %p256 = scmp.ne.s32.totalorder %s245, %s248
      %p257 = scmp.eq.s32.totalorder %s25, 1
      %p258 = por %p256, %p257
      %p259 = scmp.ne.s32.totalorder %s248, %s249
      %p260 = scmp.eq.s32.totalorder %s25, 0
      %p261 = por %p259, %p260
      %p262 = scmp.ne.s32.totalorder %s248, %s249
      %p263 = scmp.eq.s32.totalorder %s26, 1
      %p264 = por %p262, %p263
      %p266 = scmp.ne.s32.totalorder %s249, %s265
      %p267 = scmp.eq.s32.totalorder %s26, 0
      %p268 = por %p266, %p267
      %p269 = scmp.le.s32.totalorder 1, %s20
      %p270 = scmp.lt.s32.totalorder %s20, 3
      %p271 = pnand %p269, %p270
      %p272 = pneg %p271
      // Predicated region
      $region9: #{tpu_custom_call.1} parent=5 // pred_check
        _
      $region10: #{tpu_custom_call.1} parent=5 // pred_check_branch
        %274 = sbr.rel (%p271) target = $region12
      $region11: #{tpu_custom_call.1} parent=5 // pred_region
        %s275 = ssub.s32 %s20, 1
        // Predicated region
        $region13: #{tpu_custom_call.1} parent=11 // pred_check
          %p276 = pneg %p67
        $region14: #{tpu_custom_call.1} parent=11 // pred_check_branch
          %278 = sbr.rel (%p276) target = $region16
        $region15: #{tpu_custom_call.1} parent=11 // pred_region
          %s280 = ssub.s32 2304, 2304
          %281 = vsyncadd [#allocation4], %s280
          %s282 = sshll.u32 [#allocation3], 4
          %s283 = int_to_ptr.vmem [resolvable:$true] %s282
          %288 = dma.hbm_to_vmem [thread:$0]  %s1, 2304, %s283, [#allocation4], 256, 256, 16
        $region16: #{tpu_custom_call.1} parent=11 // pred_fallthru
          _
        // Predicated region
        $region17: #{tpu_custom_call.1} parent=11 // pred_check
          %p289 = pneg %p88
        $region18: #{tpu_custom_call.1} parent=11 // pred_check_branch
          %291 = sbr.rel (%p289) target = $region20
        $region19: #{tpu_custom_call.1} parent=11 // pred_region
          _
        $region20: #{tpu_custom_call.1} parent=11 // pred_fallthru
          _
        // Predicated region
        $region21: #{tpu_custom_call.1} parent=11 // pred_check
          %p292 = pneg %p109
        $region22: #{tpu_custom_call.1} parent=11 // pred_check_branch
          %294 = sbr.rel (%p292) target = $region24
        $region23: #{tpu_custom_call.1} parent=11 // pred_region
          _
        $region24: #{tpu_custom_call.1} parent=11 // pred_fallthru
          _
        // Predicated region
        $region25: #{tpu_custom_call.1} parent=11 // pred_check
          %p295 = pneg %p130
        $region26: #{tpu_custom_call.1} parent=11 // pred_check_branch
          %297 = sbr.rel (%p295) target = $region28
        $region27: #{tpu_custom_call.1} parent=11 // pred_region
          _
        $region28: #{tpu_custom_call.1} parent=11 // pred_fallthru
          _
        // Predicated region
        $region29: #{tpu_custom_call.1} parent=11 // pred_check
          %p298 = pneg %p151
        $region30: #{tpu_custom_call.1} parent=11 // pred_check_branch
          %300 = sbr.rel (%p298) target = $region32
        $region31: #{tpu_custom_call.1} parent=11 // pred_region
          _
        $region32: #{tpu_custom_call.1} parent=11 // pred_fallthru
          _
        // Predicated region
        $region33: #{tpu_custom_call.1} parent=11 // pred_check
          %p301 = pneg %p172
        $region34: #{tpu_custom_call.1} parent=11 // pred_check_branch
          %303 = sbr.rel (%p301) target = $region36
        $region35: #{tpu_custom_call.1} parent=11 // pred_region
          _
        $region36: #{tpu_custom_call.1} parent=11 // pred_fallthru
          _
        // Predicated region
        $region37: #{tpu_custom_call.1} parent=11 // pred_check
          %p304 = pneg %p193
        $region38: #{tpu_custom_call.1} parent=11 // pred_check_branch
          %306 = sbr.rel (%p304) target = $region40
        $region39: #{tpu_custom_call.1} parent=11 // pred_region
          _
        $region40: #{tpu_custom_call.1} parent=11 // pred_fallthru
          _
        // Predicated region
        $region41: #{tpu_custom_call.1} parent=11 // pred_check
          %p307 = pneg %p214
        $region42: #{tpu_custom_call.1} parent=11 // pred_check_branch
          %309 = sbr.rel (%p307) target = $region44
        $region43: #{tpu_custom_call.1} parent=11 // pred_region
          _
        $region44: #{tpu_custom_call.1} parent=11 // pred_fallthru
          _
        // Predicated region
        $region45: #{tpu_custom_call.1} parent=11 // pred_check
          %p310 = pneg %p235
        $region46: #{tpu_custom_call.1} parent=11 // pred_check_branch
          %312 = sbr.rel (%p310) target = $region48
        $region47: #{tpu_custom_call.1} parent=11 // pred_region
          _
        $region48: #{tpu_custom_call.1} parent=11 // pred_fallthru
          _
      $region12: #{tpu_custom_call.1} parent=5 // pred_fallthru
        _
      %p313 = scmp.lt.s32.totalorder %s20, 2
      // Predicated region
      $region49: #{tpu_custom_call.1} parent=5 // pred_check
        %p314 = pneg %p313
      $region50: #{tpu_custom_call.1} parent=5 // pred_check_branch
        %316 = sbr.rel (%p314) target = $region52
      $region51: #{tpu_custom_call.1} parent=5 // pred_region
        // Predicated region
        $region53: #{tpu_custom_call.1} parent=51 // pred_check
          %p317 = pneg %p40
        $region54: #{tpu_custom_call.1} parent=51 // pred_check_branch
          %319 = sbr.rel (%p317) target = $region56
        $region55: #{tpu_custom_call.1} parent=51 // pred_region
          %s320 = smul.u32 2, %s20
          %p321 = scmp.lt.s32.totalorder %s320, 3
          %s322 = scalar_select %p321, %s320, 3
          %s323 = smul.addr %s322, 4
          %s324 = scalar_lea.vmem %s0, %s323
          %s325 = smul.u32 2, %s20
        $region56: #{tpu_custom_call.1} parent=51 // pred_fallthru
          _
      $region52: #{tpu_custom_call.1} parent=5 // pred_fallthru
        _
      %p326 = scmp.le.s32.totalorder 1, %s20
      %p327 = scmp.lt.s32.totalorder %s20, 3
      %p328 = pnand %p326, %p327
      %p329 = pneg %p328
      // Predicated region
      $region57: #{tpu_custom_call.1} parent=5 // pred_check
        _
      $region58: #{tpu_custom_call.1} parent=5 // pred_check_branch
        %331 = sbr.rel (%p328) target = $region60
      $region59: #{tpu_custom_call.1} parent=5 // pred_region
        %s332 = ssub.s32 %s20, 1
        // Predicated region
        $region61: #{tpu_custom_call.1} parent=59 // pred_check
          %p333 = pneg %p67
        $region62: #{tpu_custom_call.1} parent=59 // pred_check_branch
          %335 = sbr.rel (%p333) target = $region64
        $region63: #{tpu_custom_call.1} parent=59 // pred_region
          %336 = dma.done [#allocation4], 2304
        $region64: #{tpu_custom_call.1} parent=59 // pred_fallthru
          _
        %s337 = smul.u32 2, %s25
        %p338 = scmp.lt.s32.totalorder %s337, 3
        %s339 = scalar_select %p338, %s337, 3
        %s340 = smul.addr %s339, 4
        %s341 = scalar_lea.vmem %s0, %s340
        %p342 = pneg %p46
        %p343 = pneg %p43
        %p344 = pneg %p67
        %p345 = pneg %p64
        %p346 = pneg %p88
        %p347 = pneg %p85
        %p348 = pneg %p109
        %p349 = pneg %p106
        %p350 = pneg %p130
        %p351 = pneg %p127
        %p352 = pneg %p151
        %p353 = pneg %p148
        %p354 = pneg %p172
        %p355 = pneg %p169
        %p356 = pneg %p193
        %p357 = pneg %p190
        %p358 = pneg %p214
        %p359 = pneg %p211
        %p360 = pneg %p235
        %p361 = pneg %p232
        %p362 = pneg %p261
        %p363 = pneg %p258
        %s364 = sand.u32 %s248, 1
        %s365 = scalar_lea.sflag [#allocation5], %s364
        %s366 = sand.u32 %s248, 1
        %s367 = smul.addr %s366, 16
        %s368 = scalar_lea.vmem [#allocation6], %s367
        %s369 = smul.u32 2, %s25
        %p370 = scmp.lt.s32.totalorder %s369, 3
        %s371 = scalar_select %p370, %s369, 3
        %s372 = smul.addr %s371, 4
        %s373 = scalar_lea.vmem %s0, %s372
        %s374 = smul.u32 2, %s25
        %s375 = smul.u32 2, %s25
        %v377 = vld [vmem:[%s373] sm:$0xff]
        %v378 = vld [vmem:[%s2] sm:$0xff]
        %v379 = vld [vmem:[%s3] sm:$0xff]
        %381 = vset.pattern.permute.xlu0 0
        %382 = vperm.xlu0 %381, %v379
        %v383 = vpop.permute.xlu0 %382
        %386 = vset.pattern.permute.xlu0 0
        %387 = vperm.xlu0 %386, %v378
        %v388 = vpop.permute.xlu0 %387
        %v391 = vlaneseq
        %v392 = vshrl.u32 %v391, 7
        %v393 = vsub.s32 0, %v392
        %v394 = vrot.slane %v377, %v393
        %v395 = vlaneseq
        %v396 = vshrl.u32 %v395, 7
        %v397 = vsub.s32 4, %v396
        %v398 = vrot.slane %v377, %v397
        %v401 = vlaneseq
        %v402 = vshrl.u32 %v401, 7
        %v403 = vsub.s32 0, %v402
        %v404 = vrot.slane %v394, %v403
        %v405 = vlaneseq
        %v406 = vshrl.u32 %v405, 7
        %v407 = vsub.s32 0, %v406
        %v408 = vrot.slane %v398, %v407
        %v409 = vmul.f32 %v388, %v404
        %v410 = vmul.f32 %v388, %v408
        %v411 = vadd.f32 %v383, %v409
        %v412 = vadd.f32 %v383, %v410
        %413 = vset.pattern.permute.xlu0 1
        %414 = vperm.xlu0 %413, %v378
        %v415 = vpop.permute.xlu0 %414
        %v417 = vlaneseq
        %v418 = vshrl.u32 %v417, 7
        %v419 = vsub.s32 1, %v418
        %v420 = vrot.slane %v377, %v419
        %v421 = vlaneseq
        %v422 = vshrl.u32 %v421, 7
        %v423 = vsub.s32 5, %v422
        %v424 = vrot.slane %v377, %v423
        %v427 = vlaneseq
        %v428 = vshrl.u32 %v427, 7
        %v429 = vsub.s32 1, %v428
        %v430 = vrot.slane %v420, %v429
        %v431 = vlaneseq
        %v432 = vshrl.u32 %v431, 7
        %v433 = vsub.s32 1, %v432
        %v434 = vrot.slane %v424, %v433
        %v435 = vmul.f32 %v415, %v430
        %v436 = vmul.f32 %v415, %v434
        %v437 = vadd.f32 %v411, %v435
        %v438 = vadd.f32 %v412, %v436
        %439 = vset.pattern.permute.xlu0 2
        %440 = vperm.xlu0 %439, %v378
        %v441 = vpop.permute.xlu0 %440
        %v443 = vlaneseq
        %v444 = vshrl.u32 %v443, 7
        %v445 = vsub.s32 2, %v444
        %v446 = vrot.slane %v377, %v445
        %v447 = vlaneseq
        %v448 = vshrl.u32 %v447, 7
        %v449 = vsub.s32 6, %v448
        %v450 = vrot.slane %v377, %v449
        %v453 = vlaneseq
        %v454 = vshrl.u32 %v453, 7
        %v455 = vsub.s32 2, %v454
        %v456 = vrot.slane %v446, %v455
        %v457 = vlaneseq
        %v458 = vshrl.u32 %v457, 7
        %v459 = vsub.s32 2, %v458
        %v460 = vrot.slane %v450, %v459
        %v461 = vmul.f32 %v441, %v456
        %v462 = vmul.f32 %v441, %v460
        %v463 = vadd.f32 %v437, %v461
        %v464 = vadd.f32 %v438, %v462
        %465 = vset.pattern.permute.xlu0 3
        %466 = vperm.xlu0 %465, %v378
        %v467 = vpop.permute.xlu0 %466
        %v469 = vlaneseq
        %v470 = vshrl.u32 %v469, 7
        %v471 = vsub.s32 3, %v470
        %v472 = vrot.slane %v377, %v471
        %v473 = vlaneseq
        %v474 = vshrl.u32 %v473, 7
        %v475 = vsub.s32 7, %v474
        %v476 = vrot.slane %v377, %v475
        %v479 = vlaneseq
        %v480 = vshrl.u32 %v479, 7
        %v481 = vsub.s32 3, %v480
        %v482 = vrot.slane %v472, %v481
        %v483 = vlaneseq
        %v484 = vshrl.u32 %v483, 7
        %v485 = vsub.s32 3, %v484
        %v486 = vrot.slane %v476, %v485
        %v487 = vmul.f32 %v467, %v482
        %v488 = vmul.f32 %v467, %v486
        %v489 = vadd.f32 %v463, %v487
        %v490 = vadd.f32 %v464, %v488
        %v491 = vmax.f32 %v489, 0.0
        %v492 = vmax.f32 %v490, 0.0
        %v493 = vld [vmem:[%s4] sm:$0xf]
        %v494 = vld [vmem:[%s5] sm:$0xf]
        %496 = vset.pattern.permute.xlu0 0
        %497 = vperm.xlu0 %496, %v494
        %v498 = vpop.permute.xlu0 %497
        %501 = vset.pattern.permute.xlu0 0
        %502 = vperm.xlu0 %501, %v493
        %v503 = vpop.permute.xlu0 %502
        %v505 = vlaneseq
        %v506 = vshrl.u32 %v505, 7
        %v507 = vsub.s32 0, %v506
        %v508 = vrot.slane %v491, %v507
        %v509 = vlaneseq
        %v510 = vshrl.u32 %v509, 7
        %v511 = vsub.s32 0, %v510
        %v512 = vrot.slane %v492, %v511
        %v513 = vmul.f32 %v503, %v508
        %v514 = vmul.f32 %v503, %v512
        %v515 = vadd.f32 %v498, %v513
        %v516 = vadd.f32 %v498, %v514
        %517 = vset.pattern.permute.xlu0 1
        %518 = vperm.xlu0 %517, %v493
        %v519 = vpop.permute.xlu0 %518
        %v521 = vlaneseq
        %v522 = vshrl.u32 %v521, 7
        %v523 = vsub.s32 1, %v522
        %v524 = vrot.slane %v491, %v523
        %v525 = vlaneseq
        %v526 = vshrl.u32 %v525, 7
        %v527 = vsub.s32 1, %v526
        %v528 = vrot.slane %v492, %v527
        %v529 = vmul.f32 %v519, %v524
        %v530 = vmul.f32 %v519, %v528
        %v531 = vadd.f32 %v515, %v529
        %v532 = vadd.f32 %v516, %v530
        %533 = vset.pattern.permute.xlu0 2
        %534 = vperm.xlu0 %533, %v493
        %v535 = vpop.permute.xlu0 %534
        %v537 = vlaneseq
        %v538 = vshrl.u32 %v537, 7
        %v539 = vsub.s32 2, %v538
        %v540 = vrot.slane %v491, %v539
        %v541 = vlaneseq
        %v542 = vshrl.u32 %v541, 7
        %v543 = vsub.s32 2, %v542
        %v544 = vrot.slane %v492, %v543
        %v545 = vmul.f32 %v535, %v540
        %v546 = vmul.f32 %v535, %v544
        %v547 = vadd.f32 %v531, %v545
        %v548 = vadd.f32 %v532, %v546
        %549 = vset.pattern.permute.xlu0 3
        %550 = vperm.xlu0 %549, %v493
        %v551 = vpop.permute.xlu0 %550
        %v553 = vlaneseq
        %v554 = vshrl.u32 %v553, 7
        %v555 = vsub.s32 3, %v554
        %v556 = vrot.slane %v491, %v555
        %v557 = vlaneseq
        %v558 = vshrl.u32 %v557, 7
        %v559 = vsub.s32 3, %v558
        %v560 = vrot.slane %v492, %v559
        %v561 = vmul.f32 %v551, %v556
        %v562 = vmul.f32 %v551, %v560
        %v563 = vadd.f32 %v547, %v561
        %v564 = vadd.f32 %v548, %v562
        %565 = vset.pattern.permute.xlu0 4
        %566 = vperm.xlu0 %565, %v493
        %v567 = vpop.permute.xlu0 %566
        %v569 = vlaneseq
        %v570 = vshrl.u32 %v569, 7
        %v571 = vsub.s32 4, %v570
        %v572 = vrot.slane %v491, %v571
        %v573 = vlaneseq
        %v574 = vshrl.u32 %v573, 7
        %v575 = vsub.s32 4, %v574
        %v576 = vrot.slane %v492, %v575
        %v577 = vmul.f32 %v567, %v572
        %v578 = vmul.f32 %v567, %v576
        %v579 = vadd.f32 %v563, %v577
        %v580 = vadd.f32 %v564, %v578
        %581 = vset.pattern.permute.xlu0 5
        %582 = vperm.xlu0 %581, %v493
        %v583 = vpop.permute.xlu0 %582
        %v585 = vlaneseq
        %v586 = vshrl.u32 %v585, 7
        %v587 = vsub.s32 5, %v586
        %v588 = vrot.slane %v491, %v587
        %v589 = vlaneseq
        %v590 = vshrl.u32 %v589, 7
        %v591 = vsub.s32 5, %v590
        %v592 = vrot.slane %v492, %v591
        %v593 = vmul.f32 %v583, %v588
        %v594 = vmul.f32 %v583, %v592
        %v595 = vadd.f32 %v579, %v593
        %v596 = vadd.f32 %v580, %v594
        %597 = vset.pattern.permute.xlu0 6
        %598 = vperm.xlu0 %597, %v493
        %v599 = vpop.permute.xlu0 %598
        %v601 = vlaneseq
        %v602 = vshrl.u32 %v601, 7
        %v603 = vsub.s32 6, %v602
        %v604 = vrot.slane %v491, %v603
        %v605 = vlaneseq
        %v606 = vshrl.u32 %v605, 7
        %v607 = vsub.s32 6, %v606
        %v608 = vrot.slane %v492, %v607
        %v609 = vmul.f32 %v599, %v604
        %v610 = vmul.f32 %v599, %v608
        %v611 = vadd.f32 %v595, %v609
        %v612 = vadd.f32 %v596, %v610
        %613 = vset.pattern.permute.xlu0 7
        %614 = vperm.xlu0 %613, %v493
        %v615 = vpop.permute.xlu0 %614
        %v617 = vlaneseq
        %v618 = vshrl.u32 %v617, 7
        %v619 = vsub.s32 7, %v618
        %v620 = vrot.slane %v491, %v619
        %v621 = vlaneseq
        %v622 = vshrl.u32 %v621, 7
        %v623 = vsub.s32 7, %v622
        %v624 = vrot.slane %v492, %v623
        %v625 = vmul.f32 %v615, %v620
        %v626 = vmul.f32 %v615, %v624
        %v627 = vadd.f32 %v611, %v625
        %v628 = vadd.f32 %v612, %v626
        %v629 = vmax.f32 %v627, 0.0
        %v630 = vmax.f32 %v628, 0.0
        %v631 = vld [vmem:[%s7] sm:$0xff]
        %633 = vset.pattern.permute.xlu0 0
        %634 = vperm.xlu0 %633, %v631
        %v635 = vpop.permute.xlu0 %634
        %637 = vrot.lane.b32.xlu0 %v629, 17
        %v638 = vpop.permute.xlu0 %637
        %639 = vrot.lane.b32.xlu0 %v630, 17
        %v640 = vpop.permute.xlu0 %639
        %v641 = vlaneseq
        %v642 = vand.u32 %v641, 127
        %vm643 = vcmp.lt.s32.totalorder %v642, 17
        %v644 = vsel %vm643, %v638, %v640
        %v645 = vsel %vm643, %v640, %v638
        %v646 = vld [vmem:[#allocation3] sm:$0xf]
        %v647 = vld [vmem:[#allocation3 + $0x8] sm:$0xf]
        %v648 = vmul.f32 %v645, %v646
        %v649 = vmul.f32 %v644, %v647
        %v650 = vld [vmem:[%s6] sm:$0xff]
        %652 = vset.pattern.permute.xlu0 0
        %653 = vperm.xlu0 %652, %v650
        %v654 = vpop.permute.xlu0 %653
        %v656 = vlaneseq
        %v657 = vshrl.u32 %v656, 7
        %v658 = vsub.s32 0, %v657
        %v659 = vrot.slane %v648, %v658
        %v660 = vlaneseq
        %v661 = vshrl.u32 %v660, 7
        %v662 = vsub.s32 0, %v661
        %v663 = vrot.slane %v649, %v662
        %v664 = vmul.f32 %v654, %v659
        %v665 = vmul.f32 %v654, %v663
        %v666 = vadd.f32 %v635, %v664
        %v667 = vadd.f32 %v635, %v665
        %668 = vset.pattern.permute.xlu0 1
        %669 = vperm.xlu0 %668, %v650
        %v670 = vpop.permute.xlu0 %669
        %v672 = vlaneseq
        %v673 = vshrl.u32 %v672, 7
        %v674 = vsub.s32 1, %v673
        %v675 = vrot.slane %v648, %v674
        %v676 = vlaneseq
        %v677 = vshrl.u32 %v676, 7
        %v678 = vsub.s32 1, %v677
        %v679 = vrot.slane %v649, %v678
        %v680 = vmul.f32 %v670, %v675
        %v681 = vmul.f32 %v670, %v679
        %v682 = vadd.f32 %v666, %v680
        %v683 = vadd.f32 %v667, %v681
        %684 = vset.pattern.permute.xlu0 2
        %685 = vperm.xlu0 %684, %v650
        %v686 = vpop.permute.xlu0 %685
        %v688 = vlaneseq
        %v689 = vshrl.u32 %v688, 7
        %v690 = vsub.s32 2, %v689
        %v691 = vrot.slane %v648, %v690
        %v692 = vlaneseq
        %v693 = vshrl.u32 %v692, 7
        %v694 = vsub.s32 2, %v693
        %v695 = vrot.slane %v649, %v694
        %v696 = vmul.f32 %v686, %v691
        %v697 = vmul.f32 %v686, %v695
        %v698 = vadd.f32 %v682, %v696
        %v699 = vadd.f32 %v683, %v697
        %700 = vset.pattern.permute.xlu0 3
        %701 = vperm.xlu0 %700, %v650
        %v702 = vpop.permute.xlu0 %701
        %v704 = vlaneseq
        %v705 = vshrl.u32 %v704, 7
        %v706 = vsub.s32 3, %v705
        %v707 = vrot.slane %v648, %v706
        %v708 = vlaneseq
        %v709 = vshrl.u32 %v708, 7
        %v710 = vsub.s32 3, %v709
        %v711 = vrot.slane %v649, %v710
        %v712 = vmul.f32 %v702, %v707
        %v713 = vmul.f32 %v702, %v711
        %v714 = vadd.f32 %v698, %v712
        %v715 = vadd.f32 %v699, %v713
        %716 = vrot.lane.b32.xlu0 %v629, 16
        %v717 = vpop.permute.xlu0 %716
        %718 = vrot.lane.b32.xlu0 %v630, 16
        %v719 = vpop.permute.xlu0 %718
        %vm720 = vcmp.lt.s32.totalorder %v642, 16
        %v721 = vsel %vm720, %v717, %v719
        %v722 = vsel %vm720, %v719, %v717
        %s723 = scalar_lea.vmem [#allocation3], 16
        %v724 = vld [vmem:[%s723] sm:$0xf]
        %v725 = vld [vmem:[%s723 + $0x8] sm:$0xf]
        %v726 = vmul.f32 %v722, %v724
        %v727 = vmul.f32 %v721, %v725
        %728 = vset.pattern.permute.xlu0 4
        %729 = vperm.xlu0 %728, %v650
        %v730 = vpop.permute.xlu0 %729
        %v732 = vlaneseq
        %v733 = vshrl.u32 %v732, 7
        %v734 = vsub.s32 0, %v733
        %v735 = vrot.slane %v726, %v734
        %v736 = vlaneseq
        %v737 = vshrl.u32 %v736, 7
        %v738 = vsub.s32 0, %v737
        %v739 = vrot.slane %v727, %v738
        %v740 = vmul.f32 %v730, %v735
        %v741 = vmul.f32 %v730, %v739
        %v742 = vadd.f32 %v714, %v740
        %v743 = vadd.f32 %v715, %v741
        %744 = vset.pattern.permute.xlu0 5
        %745 = vperm.xlu0 %744, %v650
        %v746 = vpop.permute.xlu0 %745
        %v748 = vlaneseq
        %v749 = vshrl.u32 %v748, 7
        %v750 = vsub.s32 1, %v749
        %v751 = vrot.slane %v726, %v750
        %v752 = vlaneseq
        %v753 = vshrl.u32 %v752, 7
        %v754 = vsub.s32 1, %v753
        %v755 = vrot.slane %v727, %v754
        %v756 = vmul.f32 %v746, %v751
        %v757 = vmul.f32 %v746, %v755
        %v758 = vadd.f32 %v742, %v756
        %v759 = vadd.f32 %v743, %v757
        %760 = vset.pattern.permute.xlu0 6
        %761 = vperm.xlu0 %760, %v650
        %v762 = vpop.permute.xlu0 %761
        %v764 = vlaneseq
        %v765 = vshrl.u32 %v764, 7
        %v766 = vsub.s32 2, %v765
        %v767 = vrot.slane %v726, %v766
        %v768 = vlaneseq
        %v769 = vshrl.u32 %v768, 7
        %v770 = vsub.s32 2, %v769
        %v771 = vrot.slane %v727, %v770
        %v772 = vmul.f32 %v762, %v767
        %v773 = vmul.f32 %v762, %v771
        %v774 = vadd.f32 %v758, %v772
        %v775 = vadd.f32 %v759, %v773
        %776 = vset.pattern.permute.xlu0 7
        %777 = vperm.xlu0 %776, %v650
        %v778 = vpop.permute.xlu0 %777
        %v780 = vlaneseq
        %v781 = vshrl.u32 %v780, 7
        %v782 = vsub.s32 3, %v781
        %v783 = vrot.slane %v726, %v782
        %v784 = vlaneseq
        %v785 = vshrl.u32 %v784, 7
        %v786 = vsub.s32 3, %v785
        %v787 = vrot.slane %v727, %v786
        %v788 = vmul.f32 %v778, %v783
        %v789 = vmul.f32 %v778, %v787
        %v790 = vadd.f32 %v774, %v788
        %v791 = vadd.f32 %v775, %v789
        %792 = vrot.lane.b32.xlu0 %v629, 15
        %v793 = vpop.permute.xlu0 %792
        %794 = vrot.lane.b32.xlu0 %v630, 15
        %v795 = vpop.permute.xlu0 %794
        %vm796 = vcmp.lt.s32.totalorder %v642, 15
        %v797 = vsel %vm796, %v793, %v795
        %v798 = vsel %vm796, %v795, %v793
        %s799 = scalar_lea.vmem [#allocation3], 32
        %v800 = vld [vmem:[%s799] sm:$0xf]
        %v801 = vld [vmem:[%s799 + $0x8] sm:$0xf]
        %v802 = vmul.f32 %v798, %v800
        %v803 = vmul.f32 %v797, %v801
        %804 = vset.pattern.permute.xlu0 8
        %805 = vperm.xlu0 %804, %v650
        %v806 = vpop.permute.xlu0 %805
        %v808 = vlaneseq
        %v809 = vshrl.u32 %v808, 7
        %v810 = vsub.s32 0, %v809
        %v811 = vrot.slane %v802, %v810
        %v812 = vlaneseq
        %v813 = vshrl.u32 %v812, 7
        %v814 = vsub.s32 0, %v813
        %v815 = vrot.slane %v803, %v814
        %v816 = vmul.f32 %v806, %v811
        %v817 = vmul.f32 %v806, %v815
        %v818 = vadd.f32 %v790, %v816
        %v819 = vadd.f32 %v791, %v817
        %820 = vset.pattern.permute.xlu0 9
        %821 = vperm.xlu0 %820, %v650
        %v822 = vpop.permute.xlu0 %821
        %v824 = vlaneseq
        %v825 = vshrl.u32 %v824, 7
        %v826 = vsub.s32 1, %v825
        %v827 = vrot.slane %v802, %v826
        %v828 = vlaneseq
        %v829 = vshrl.u32 %v828, 7
        %v830 = vsub.s32 1, %v829
        %v831 = vrot.slane %v803, %v830
        %v832 = vmul.f32 %v822, %v827
        %v833 = vmul.f32 %v822, %v831
        %v834 = vadd.f32 %v818, %v832
        %v835 = vadd.f32 %v819, %v833
        %836 = vset.pattern.permute.xlu0 10
        %837 = vperm.xlu0 %836, %v650
        %v838 = vpop.permute.xlu0 %837
        %v840 = vlaneseq
        %v841 = vshrl.u32 %v840, 7
        %v842 = vsub.s32 2, %v841
        %v843 = vrot.slane %v802, %v842
        %v844 = vlaneseq
        %v845 = vshrl.u32 %v844, 7
        %v846 = vsub.s32 2, %v845
        %v847 = vrot.slane %v803, %v846
        %v848 = vmul.f32 %v838, %v843
        %v849 = vmul.f32 %v838, %v847
        %v850 = vadd.f32 %v834, %v848
        %v851 = vadd.f32 %v835, %v849
        %852 = vset.pattern.permute.xlu0 11
        %853 = vperm.xlu0 %852, %v650
        %v854 = vpop.permute.xlu0 %853
        %v856 = vlaneseq
        %v857 = vshrl.u32 %v856, 7
        %v858 = vsub.s32 3, %v857
        %v859 = vrot.slane %v802, %v858
        %v860 = vlaneseq
        %v861 = vshrl.u32 %v860, 7
        %v862 = vsub.s32 3, %v861
        %v863 = vrot.slane %v803, %v862
        %v864 = vmul.f32 %v854, %v859
        %v865 = vmul.f32 %v854, %v863
        %v866 = vadd.f32 %v850, %v864
        %v867 = vadd.f32 %v851, %v865
        %868 = vrot.lane.b32.xlu0 %v629, 1
        %v869 = vpop.permute.xlu0 %868
        %870 = vrot.lane.b32.xlu0 %v630, 1
        %v871 = vpop.permute.xlu0 %870
        %vm872 = vcmp.lt.s32.totalorder %v642, 1
        %v873 = vsel %vm872, %v869, %v871
        %v874 = vsel %vm872, %v871, %v869
        %s875 = scalar_lea.vmem [#allocation3], 48
        %v876 = vld [vmem:[%s875] sm:$0xf]
        %v877 = vld [vmem:[%s875 + $0x8] sm:$0xf]
        %v878 = vmul.f32 %v874, %v876
        %v879 = vmul.f32 %v873, %v877
        %880 = vset.pattern.permute.xlu0 12
        %881 = vperm.xlu0 %880, %v650
        %v882 = vpop.permute.xlu0 %881
        %v884 = vlaneseq
        %v885 = vshrl.u32 %v884, 7
        %v886 = vsub.s32 0, %v885
        %v887 = vrot.slane %v878, %v886
        %v888 = vlaneseq
        %v889 = vshrl.u32 %v888, 7
        %v890 = vsub.s32 0, %v889
        %v891 = vrot.slane %v879, %v890
        %v892 = vmul.f32 %v882, %v887
        %v893 = vmul.f32 %v882, %v891
        %v894 = vadd.f32 %v866, %v892
        %v895 = vadd.f32 %v867, %v893
        %896 = vset.pattern.permute.xlu0 13
        %897 = vperm.xlu0 %896, %v650
        %v898 = vpop.permute.xlu0 %897
        %v900 = vlaneseq
        %v901 = vshrl.u32 %v900, 7
        %v902 = vsub.s32 1, %v901
        %v903 = vrot.slane %v878, %v902
        %v904 = vlaneseq
        %v905 = vshrl.u32 %v904, 7
        %v906 = vsub.s32 1, %v905
        %v907 = vrot.slane %v879, %v906
        %v908 = vmul.f32 %v898, %v903
        %v909 = vmul.f32 %v898, %v907
        %v910 = vadd.f32 %v894, %v908
        %v911 = vadd.f32 %v895, %v909
        %912 = vset.pattern.permute.xlu0 14
        %913 = vperm.xlu0 %912, %v650
        %v914 = vpop.permute.xlu0 %913
        %v916 = vlaneseq
        %v917 = vshrl.u32 %v916, 7
        %v918 = vsub.s32 2, %v917
        %v919 = vrot.slane %v878, %v918
        %v920 = vlaneseq
        %v921 = vshrl.u32 %v920, 7
        %v922 = vsub.s32 2, %v921
        %v923 = vrot.slane %v879, %v922
        %v924 = vmul.f32 %v914, %v919
        %v925 = vmul.f32 %v914, %v923
        %v926 = vadd.f32 %v910, %v924
        %v927 = vadd.f32 %v911, %v925
        %928 = vset.pattern.permute.xlu0 15
        %929 = vperm.xlu0 %928, %v650
        %v930 = vpop.permute.xlu0 %929
        %v932 = vlaneseq
        %v933 = vshrl.u32 %v932, 7
        %v934 = vsub.s32 3, %v933
        %v935 = vrot.slane %v878, %v934
        %v936 = vlaneseq
        %v937 = vshrl.u32 %v936, 7
        %v938 = vsub.s32 3, %v937
        %v939 = vrot.slane %v879, %v938
        %v940 = vmul.f32 %v930, %v935
        %v941 = vmul.f32 %v930, %v939
        %v942 = vadd.f32 %v926, %v940
        %v943 = vadd.f32 %v927, %v941
        %944 = vset.pattern.permute.xlu0 16
        %945 = vperm.xlu0 %944, %v650
        %v946 = vpop.permute.xlu0 %945
        %v948 = vlaneseq
        %v949 = vshrl.u32 %v948, 7
        %v950 = vsub.s32 0, %v949
        %v951 = vrot.slane %v629, %v950
        %v952 = vlaneseq
        %v953 = vshrl.u32 %v952, 7
        %v954 = vsub.s32 0, %v953
        %v955 = vrot.slane %v630, %v954
        %v956 = vmul.f32 %v946, %v951
        %v957 = vmul.f32 %v946, %v955
        %v958 = vadd.f32 %v942, %v956
        %v959 = vadd.f32 %v943, %v957
        %960 = vset.pattern.permute.xlu0 17
        %961 = vperm.xlu0 %960, %v650
        %v962 = vpop.permute.xlu0 %961
        %v964 = vlaneseq
        %v965 = vshrl.u32 %v964, 7
        %v966 = vsub.s32 1, %v965
        %v967 = vrot.slane %v629, %v966
        %v968 = vlaneseq
        %v969 = vshrl.u32 %v968, 7
        %v970 = vsub.s32 1, %v969
        %v971 = vrot.slane %v630, %v970
        %v972 = vmul.f32 %v962, %v967
        %v973 = vmul.f32 %v962, %v971
        %v974 = vadd.f32 %v958, %v972
        %v975 = vadd.f32 %v959, %v973
        %976 = vset.pattern.permute.xlu0 18
        %977 = vperm.xlu0 %976, %v650
        %v978 = vpop.permute.xlu0 %977
        %v980 = vlaneseq
        %v981 = vshrl.u32 %v980, 7
        %v982 = vsub.s32 2, %v981
        %v983 = vrot.slane %v629, %v982
        %v984 = vlaneseq
        %v985 = vshrl.u32 %v984, 7
        %v986 = vsub.s32 2, %v985
        %v987 = vrot.slane %v630, %v986
        %v988 = vmul.f32 %v978, %v983
        %v989 = vmul.f32 %v978, %v987
        %v990 = vadd.f32 %v974, %v988
        %v991 = vadd.f32 %v975, %v989
        %992 = vset.pattern.permute.xlu0 19
        %993 = vperm.xlu0 %992, %v650
        %v994 = vpop.permute.xlu0 %993
        %v996 = vlaneseq
        %v997 = vshrl.u32 %v996, 7
        %v998 = vsub.s32 3, %v997
        %v999 = vrot.slane %v629, %v998
        %v1000 = vlaneseq
        %v1001 = vshrl.u32 %v1000, 7
        %v1002 = vsub.s32 3, %v1001
        %v1003 = vrot.slane %v630, %v1002
        %v1004 = vmul.f32 %v994, %v999
        %v1005 = vmul.f32 %v994, %v1003
        %v1006 = vadd.f32 %v990, %v1004
        %v1007 = vadd.f32 %v991, %v1005
        %1008 = vrot.lane.b32.xlu0 %v629, 127
        %v1009 = vpop.permute.xlu0 %1008
        %1010 = vrot.lane.b32.xlu0 %v630, 127
        %v1011 = vpop.permute.xlu0 %1010
        %vm1012 = vcmp.lt.s32.totalorder %v642, 127
        %v1013 = vsel %vm1012, %v1009, %v1011
        %v1014 = vsel %vm1012, %v1011, %v1009
        %s1015 = scalar_lea.vmem [#allocation3], 80
        %v1016 = vld [vmem:[%s1015] sm:$0xf]
        %v1017 = vld [vmem:[%s1015 + $0x8] sm:$0xf]
        %v1018 = vmul.f32 %v1013, %v1016
        %v1019 = vmul.f32 %v1014, %v1017
        %1020 = vset.pattern.permute.xlu0 20
        %1021 = vperm.xlu0 %1020, %v650
        %v1022 = vpop.permute.xlu0 %1021
        %v1024 = vlaneseq
        %v1025 = vshrl.u32 %v1024, 7
        %v1026 = vsub.s32 0, %v1025
        %v1027 = vrot.slane %v1018, %v1026
        %v1028 = vlaneseq
        %v1029 = vshrl.u32 %v1028, 7
        %v1030 = vsub.s32 0, %v1029
        %v1031 = vrot.slane %v1019, %v1030
        %v1032 = vmul.f32 %v1022, %v1027
        %v1033 = vmul.f32 %v1022, %v1031
        %v1034 = vadd.f32 %v1006, %v1032
        %v1035 = vadd.f32 %v1007, %v1033
        %1036 = vset.pattern.permute.xlu0 21
        %1037 = vperm.xlu0 %1036, %v650
        %v1038 = vpop.permute.xlu0 %1037
        %v1040 = vlaneseq
        %v1041 = vshrl.u32 %v1040, 7
        %v1042 = vsub.s32 1, %v1041
        %v1043 = vrot.slane %v1018, %v1042
        %v1044 = vlaneseq
        %v1045 = vshrl.u32 %v1044, 7
        %v1046 = vsub.s32 1, %v1045
        %v1047 = vrot.slane %v1019, %v1046
        %v1048 = vmul.f32 %v1038, %v1043
        %v1049 = vmul.f32 %v1038, %v1047
        %v1050 = vadd.f32 %v1034, %v1048
        %v1051 = vadd.f32 %v1035, %v1049
        %1052 = vset.pattern.permute.xlu0 22
        %1053 = vperm.xlu0 %1052, %v650
        %v1054 = vpop.permute.xlu0 %1053
        %v1056 = vlaneseq
        %v1057 = vshrl.u32 %v1056, 7
        %v1058 = vsub.s32 2, %v1057
        %v1059 = vrot.slane %v1018, %v1058
        %v1060 = vlaneseq
        %v1061 = vshrl.u32 %v1060, 7
        %v1062 = vsub.s32 2, %v1061
        %v1063 = vrot.slane %v1019, %v1062
        %v1064 = vmul.f32 %v1054, %v1059
        %v1065 = vmul.f32 %v1054, %v1063
        %v1066 = vadd.f32 %v1050, %v1064
        %v1067 = vadd.f32 %v1051, %v1065
        %1068 = vset.pattern.permute.xlu0 23
        %1069 = vperm.xlu0 %1068, %v650
        %v1070 = vpop.permute.xlu0 %1069
        %v1072 = vlaneseq
        %v1073 = vshrl.u32 %v1072, 7
        %v1074 = vsub.s32 3, %v1073
        %v1075 = vrot.slane %v1018, %v1074
        %v1076 = vlaneseq
        %v1077 = vshrl.u32 %v1076, 7
        %v1078 = vsub.s32 3, %v1077
        %v1079 = vrot.slane %v1019, %v1078
        %v1080 = vmul.f32 %v1070, %v1075
        %v1081 = vmul.f32 %v1070, %v1079
        %v1082 = vadd.f32 %v1066, %v1080
        %v1083 = vadd.f32 %v1067, %v1081
        %1084 = vrot.lane.b32.xlu0 %v629, 113
        %v1085 = vpop.permute.xlu0 %1084
        %1086 = vrot.lane.b32.xlu0 %v630, 113
        %v1087 = vpop.permute.xlu0 %1086
        %vm1088 = vcmp.lt.s32.totalorder %v642, 113
        %v1089 = vsel %vm1088, %v1085, %v1087
        %v1090 = vsel %vm1088, %v1087, %v1085
        %s1091 = scalar_lea.vmem [#allocation3], 96
        %v1092 = vld [vmem:[%s1091] sm:$0xf]
        %v1093 = vld [vmem:[%s1091 + $0x8] sm:$0xf]
        %v1094 = vmul.f32 %v1089, %v1092
        %v1095 = vmul.f32 %v1090, %v1093
        %1096 = vset.pattern.permute.xlu0 24
        %1097 = vperm.xlu0 %1096, %v650
        %v1098 = vpop.permute.xlu0 %1097
        %v1100 = vlaneseq
        %v1101 = vshrl.u32 %v1100, 7
        %v1102 = vsub.s32 0, %v1101
        %v1103 = vrot.slane %v1094, %v1102
        %v1104 = vlaneseq
        %v1105 = vshrl.u32 %v1104, 7
        %v1106 = vsub.s32 0, %v1105
        %v1107 = vrot.slane %v1095, %v1106
        %v1108 = vmul.f32 %v1098, %v1103
        %v1109 = vmul.f32 %v1098, %v1107
        %v1110 = vadd.f32 %v1082, %v1108
        %v1111 = vadd.f32 %v1083, %v1109
        %1112 = vset.pattern.permute.xlu0 25
        %1113 = vperm.xlu0 %1112, %v650
        %v1114 = vpop.permute.xlu0 %1113
        %v1116 = vlaneseq
        %v1117 = vshrl.u32 %v1116, 7
        %v1118 = vsub.s32 1, %v1117
        %v1119 = vrot.slane %v1094, %v1118
        %v1120 = vlaneseq
        %v1121 = vshrl.u32 %v1120, 7
        %v1122 = vsub.s32 1, %v1121
        %v1123 = vrot.slane %v1095, %v1122
        %v1124 = vmul.f32 %v1114, %v1119
        %v1125 = vmul.f32 %v1114, %v1123
        %v1126 = vadd.f32 %v1110, %v1124
        %v1127 = vadd.f32 %v1111, %v1125
        %1128 = vset.pattern.permute.xlu0 26
        %1129 = vperm.xlu0 %1128, %v650
        %v1130 = vpop.permute.xlu0 %1129
        %v1132 = vlaneseq
        %v1133 = vshrl.u32 %v1132, 7
        %v1134 = vsub.s32 2, %v1133
        %v1135 = vrot.slane %v1094, %v1134
        %v1136 = vlaneseq
        %v1137 = vshrl.u32 %v1136, 7
        %v1138 = vsub.s32 2, %v1137
        %v1139 = vrot.slane %v1095, %v1138
        %v1140 = vmul.f32 %v1130, %v1135
        %v1141 = vmul.f32 %v1130, %v1139
        %v1142 = vadd.f32 %v1126, %v1140
        %v1143 = vadd.f32 %v1127, %v1141
        %1144 = vset.pattern.permute.xlu0 27
        %1145 = vperm.xlu0 %1144, %v650
        %v1146 = vpop.permute.xlu0 %1145
        %v1148 = vlaneseq
        %v1149 = vshrl.u32 %v1148, 7
        %v1150 = vsub.s32 3, %v1149
        %v1151 = vrot.slane %v1094, %v1150
        %v1152 = vlaneseq
        %v1153 = vshrl.u32 %v1152, 7
        %v1154 = vsub.s32 3, %v1153
        %v1155 = vrot.slane %v1095, %v1154
        %v1156 = vmul.f32 %v1146, %v1151
        %v1157 = vmul.f32 %v1146, %v1155
        %v1158 = vadd.f32 %v1142, %v1156
        %v1159 = vadd.f32 %v1143, %v1157
        %1160 = vrot.lane.b32.xlu0 %v629, 112
        %v1161 = vpop.permute.xlu0 %1160
        %1162 = vrot.lane.b32.xlu0 %v630, 112
        %v1163 = vpop.permute.xlu0 %1162
        %vm1164 = vcmp.lt.s32.totalorder %v642, 112
        %v1165 = vsel %vm1164, %v1161, %v1163
        %v1166 = vsel %vm1164, %v1163, %v1161
        %s1167 = scalar_lea.vmem [#allocation3], 112
        %v1168 = vld [vmem:[%s1167] sm:$0xf]
        %v1169 = vld [vmem:[%s1167 + $0x8] sm:$0xf]
        %v1170 = vmul.f32 %v1165, %v1168
        %v1171 = vmul.f32 %v1166, %v1169
        %1172 = vset.pattern.permute.xlu0 28
        %1173 = vperm.xlu0 %1172, %v650
        %v1174 = vpop.permute.xlu0 %1173
        %v1176 = vlaneseq
        %v1177 = vshrl.u32 %v1176, 7
        %v1178 = vsub.s32 0, %v1177
        %v1179 = vrot.slane %v1170, %v1178
        %v1180 = vlaneseq
        %v1181 = vshrl.u32 %v1180, 7
        %v1182 = vsub.s32 0, %v1181
        %v1183 = vrot.slane %v1171, %v1182
        %v1184 = vmul.f32 %v1174, %v1179
        %v1185 = vmul.f32 %v1174, %v1183
        %v1186 = vadd.f32 %v1158, %v1184
        %v1187 = vadd.f32 %v1159, %v1185
        %1188 = vset.pattern.permute.xlu0 29
        %1189 = vperm.xlu0 %1188, %v650
        %v1190 = vpop.permute.xlu0 %1189
        %v1192 = vlaneseq
        %v1193 = vshrl.u32 %v1192, 7
        %v1194 = vsub.s32 1, %v1193
        %v1195 = vrot.slane %v1170, %v1194
        %v1196 = vlaneseq
        %v1197 = vshrl.u32 %v1196, 7
        %v1198 = vsub.s32 1, %v1197
        %v1199 = vrot.slane %v1171, %v1198
        %v1200 = vmul.f32 %v1190, %v1195
        %v1201 = vmul.f32 %v1190, %v1199
        %v1202 = vadd.f32 %v1186, %v1200
        %v1203 = vadd.f32 %v1187, %v1201
        %1204 = vset.pattern.permute.xlu0 30
        %1205 = vperm.xlu0 %1204, %v650
        %v1206 = vpop.permute.xlu0 %1205
        %v1208 = vlaneseq
        %v1209 = vshrl.u32 %v1208, 7
        %v1210 = vsub.s32 2, %v1209
        %v1211 = vrot.slane %v1170, %v1210
        %v1212 = vlaneseq
        %v1213 = vshrl.u32 %v1212, 7
        %v1214 = vsub.s32 2, %v1213
        %v1215 = vrot.slane %v1171, %v1214
        %v1216 = vmul.f32 %v1206, %v1211
        %v1217 = vmul.f32 %v1206, %v1215
        %v1218 = vadd.f32 %v1202, %v1216
        %v1219 = vadd.f32 %v1203, %v1217
        %1220 = vset.pattern.permute.xlu0 31
        %1221 = vperm.xlu0 %1220, %v650
        %v1222 = vpop.permute.xlu0 %1221
        %v1224 = vlaneseq
        %v1225 = vshrl.u32 %v1224, 7
        %v1226 = vsub.s32 3, %v1225
        %v1227 = vrot.slane %v1170, %v1226
        %v1228 = vlaneseq
        %v1229 = vshrl.u32 %v1228, 7
        %v1230 = vsub.s32 3, %v1229
        %v1231 = vrot.slane %v1171, %v1230
        %v1232 = vmul.f32 %v1222, %v1227
        %v1233 = vmul.f32 %v1222, %v1231
        %v1234 = vadd.f32 %v1218, %v1232
        %v1235 = vadd.f32 %v1219, %v1233
        %1236 = vrot.lane.b32.xlu0 %v629, 111
        %v1237 = vpop.permute.xlu0 %1236
        %1238 = vrot.lane.b32.xlu0 %v630, 111
        %v1239 = vpop.permute.xlu0 %1238
        %vm1240 = vcmp.lt.s32.totalorder %v642, 111
        %v1241 = vsel %vm1240, %v1237, %v1239
        %v1242 = vsel %vm1240, %v1239, %v1237
        %s1243 = scalar_lea.vmem [#allocation3], 128
        %v1244 = vld [vmem:[%s1243] sm:$0xf]
        %v1245 = vld [vmem:[%s1243 + $0x8] sm:$0xf]
        %v1246 = vmul.f32 %v1241, %v1244
        %v1247 = vmul.f32 %v1242, %v1245
        %1248 = vset.pattern.permute.xlu0 32
        %1249 = vperm.xlu0 %1248, %v650
        %v1250 = vpop.permute.xlu0 %1249
        %v1252 = vlaneseq
        %v1253 = vshrl.u32 %v1252, 7
        %v1254 = vsub.s32 0, %v1253
        %v1255 = vrot.slane %v1246, %v1254
        %v1256 = vlaneseq
        %v1257 = vshrl.u32 %v1256, 7
        %v1258 = vsub.s32 0, %v1257
        %v1259 = vrot.slane %v1247, %v1258
        %v1260 = vmul.f32 %v1250, %v1255
        %v1261 = vmul.f32 %v1250, %v1259
        %v1262 = vadd.f32 %v1234, %v1260
        %v1263 = vadd.f32 %v1235, %v1261
        %1264 = vset.pattern.permute.xlu0 33
        %1265 = vperm.xlu0 %1264, %v650
        %v1266 = vpop.permute.xlu0 %1265
        %v1268 = vlaneseq
        %v1269 = vshrl.u32 %v1268, 7
        %v1270 = vsub.s32 1, %v1269
        %v1271 = vrot.slane %v1246, %v1270
        %v1272 = vlaneseq
        %v1273 = vshrl.u32 %v1272, 7
        %v1274 = vsub.s32 1, %v1273
        %v1275 = vrot.slane %v1247, %v1274
        %v1276 = vmul.f32 %v1266, %v1271
        %v1277 = vmul.f32 %v1266, %v1275
        %v1278 = vadd.f32 %v1262, %v1276
        %v1279 = vadd.f32 %v1263, %v1277
        %1280 = vset.pattern.permute.xlu0 34
        %1281 = vperm.xlu0 %1280, %v650
        %v1282 = vpop.permute.xlu0 %1281
        %v1284 = vlaneseq
        %v1285 = vshrl.u32 %v1284, 7
        %v1286 = vsub.s32 2, %v1285
        %v1287 = vrot.slane %v1246, %v1286
        %v1288 = vlaneseq
        %v1289 = vshrl.u32 %v1288, 7
        %v1290 = vsub.s32 2, %v1289
        %v1291 = vrot.slane %v1247, %v1290
        %v1292 = vmul.f32 %v1282, %v1287
        %v1293 = vmul.f32 %v1282, %v1291
        %v1294 = vadd.f32 %v1278, %v1292
        %v1295 = vadd.f32 %v1279, %v1293
        %1296 = vset.pattern.permute.xlu0 35
        %1297 = vperm.xlu0 %1296, %v650
        %v1298 = vpop.permute.xlu0 %1297
        %v1300 = vlaneseq
        %v1301 = vshrl.u32 %v1300, 7
        %v1302 = vsub.s32 3, %v1301
        %v1303 = vrot.slane %v1246, %v1302
        %v1304 = vlaneseq
        %v1305 = vshrl.u32 %v1304, 7
        %v1306 = vsub.s32 3, %v1305
        %v1307 = vrot.slane %v1247, %v1306
        %v1308 = vmul.f32 %v1298, %v1303
        %v1309 = vmul.f32 %v1298, %v1307
        %v1310 = vadd.f32 %v1294, %v1308
        %v1311 = vadd.f32 %v1295, %v1309
        %v1312 = vmax.f32 %v1310, 0.0
        %v1313 = vmax.f32 %v1311, 0.0
        %1314 = vrot.lane.b32.xlu0 %v1312, 17
        %v1315 = vpop.permute.xlu0 %1314
        %1316 = vrot.lane.b32.xlu0 %v1313, 17
        %v1317 = vpop.permute.xlu0 %1316
        %v1318 = vsel %vm643, %v1315, %v1317
        %v1319 = vsel %vm643, %v1317, %v1315
        %v1320 = vld [vmem:[#allocation3] sm:$0xff]
        %v1321 = vld [vmem:[#allocation3 + $0x8] sm:$0xff]
        %v1322 = vmul.f32 %v1319, %v1320
        %v1323 = vmul.f32 %v1318, %v1321
        %1324 = vst [vmem:[#allocation2] sm:$0xff] %v1322
        %1325 = vst [vmem:[#allocation2 + $0x8] sm:$0xff] %v1323
        %1326 = vrot.lane.b32.xlu0 %v1312, 16
        %v1327 = vpop.permute.xlu0 %1326
        %1328 = vrot.lane.b32.xlu0 %v1313, 16
        %v1329 = vpop.permute.xlu0 %1328
        %v1330 = vsel %vm720, %v1327, %v1329
        %v1331 = vsel %vm720, %v1329, %v1327
        %v1332 = vld [vmem:[%s723] sm:$0xff]
        %v1333 = vld [vmem:[%s723 + $0x8] sm:$0xff]
        %v1334 = vmul.f32 %v1331, %v1332
        %v1335 = vmul.f32 %v1330, %v1333
        %1336 = vst [vmem:[#allocation2 + $0x10] sm:$0xff] %v1334
        %1337 = vst [vmem:[#allocation2 + $0x18] sm:$0xff] %v1335
        %1338 = vrot.lane.b32.xlu0 %v1312, 15
        %v1339 = vpop.permute.xlu0 %1338
        %1340 = vrot.lane.b32.xlu0 %v1313, 15
        %v1341 = vpop.permute.xlu0 %1340
        %v1342 = vsel %vm796, %v1339, %v1341
        %v1343 = vsel %vm796, %v1341, %v1339
        %v1344 = vld [vmem:[%s799] sm:$0xff]
        %v1345 = vld [vmem:[%s799 + $0x8] sm:$0xff]
        %v1346 = vmul.f32 %v1343, %v1344
        %v1347 = vmul.f32 %v1342, %v1345
        %1348 = vst [vmem:[#allocation2 + $0x20] sm:$0xff] %v1346
        %1349 = vst [vmem:[#allocation2 + $0x28] sm:$0xff] %v1347
        %1350 = vrot.lane.b32.xlu0 %v1312, 1
        %v1351 = vpop.permute.xlu0 %1350
        %1352 = vrot.lane.b32.xlu0 %v1313, 1
        %v1353 = vpop.permute.xlu0 %1352
        %v1354 = vsel %vm872, %v1351, %v1353
        %v1355 = vsel %vm872, %v1353, %v1351
        %v1356 = vld [vmem:[%s875] sm:$0xff]
        %v1357 = vld [vmem:[%s875 + $0x8] sm:$0xff]
        %v1358 = vmul.f32 %v1355, %v1356
        %v1359 = vmul.f32 %v1354, %v1357
        %1360 = vst [vmem:[#allocation2 + $0x30] sm:$0xff] %v1358
        %1361 = vst [vmem:[#allocation2 + $0x38] sm:$0xff] %v1359
        %1362 = vst [vmem:[#allocation2 + $0x40] sm:$0xff] %v1312
        %1363 = vst [vmem:[#allocation2 + $0x48] sm:$0xff] %v1313
        %1364 = vrot.lane.b32.xlu0 %v1312, 127
        %v1365 = vpop.permute.xlu0 %1364
        %1366 = vrot.lane.b32.xlu0 %v1313, 127
        %v1367 = vpop.permute.xlu0 %1366
        %v1368 = vsel %vm1012, %v1365, %v1367
        %v1369 = vsel %vm1012, %v1367, %v1365
        %v1370 = vld [vmem:[%s1015] sm:$0xff]
        %v1371 = vld [vmem:[%s1015 + $0x8] sm:$0xff]
        %v1372 = vmul.f32 %v1368, %v1370
        %v1373 = vmul.f32 %v1369, %v1371
        %1374 = vst [vmem:[#allocation2 + $0x50] sm:$0xff] %v1372
        %1375 = vst [vmem:[#allocation2 + $0x58] sm:$0xff] %v1373
        %1376 = vrot.lane.b32.xlu0 %v1312, 113
        %v1377 = vpop.permute.xlu0 %1376
        %1378 = vrot.lane.b32.xlu0 %v1313, 113
        %v1379 = vpop.permute.xlu0 %1378
        %v1380 = vsel %vm1088, %v1377, %v1379
        %v1381 = vsel %vm1088, %v1379, %v1377
        %v1382 = vld [vmem:[%s1091] sm:$0xff]
        %v1383 = vld [vmem:[%s1091 + $0x8] sm:$0xff]
        %v1384 = vmul.f32 %v1380, %v1382
        %v1385 = vmul.f32 %v1381, %v1383
        %1386 = vst [vmem:[#allocation2 + $0x60] sm:$0xff] %v1384
        %1387 = vst [vmem:[#allocation2 + $0x68] sm:$0xff] %v1385
        %1388 = vrot.lane.b32.xlu0 %v1312, 112
        %v1389 = vpop.permute.xlu0 %1388
        %1390 = vrot.lane.b32.xlu0 %v1313, 112
        %v1391 = vpop.permute.xlu0 %1390
        %v1392 = vsel %vm1164, %v1389, %v1391
        %v1393 = vsel %vm1164, %v1391, %v1389
        %v1394 = vld [vmem:[%s1167] sm:$0xff]
        %v1395 = vld [vmem:[%s1167 + $0x8] sm:$0xff]
        %v1396 = vmul.f32 %v1392, %v1394
        %v1397 = vmul.f32 %v1393, %v1395
        %1398 = vst [vmem:[#allocation2 + $0x70] sm:$0xff] %v1396
        %1399 = vst [vmem:[#allocation2 + $0x78] sm:$0xff] %v1397
        %1400 = vrot.lane.b32.xlu0 %v1312, 111
        %v1401 = vpop.permute.xlu0 %1400
        %1402 = vrot.lane.b32.xlu0 %v1313, 111
        %v1403 = vpop.permute.xlu0 %1402
        %v1404 = vsel %vm1240, %v1401, %v1403
        %v1405 = vsel %vm1240, %v1403, %v1401
        %v1406 = vld [vmem:[%s1243] sm:$0xff]
        %v1407 = vld [vmem:[%s1243 + $0x8] sm:$0xff]
        %v1408 = vmul.f32 %v1404, %v1406
        %v1409 = vmul.f32 %v1405, %v1407
        %1410 = vst [vmem:[#allocation2 + $0x80] sm:$0xff] %v1408
        %1411 = vst [vmem:[#allocation2 + $0x88] sm:$0xff] %v1409
        %v1412 = vld [vmem:[#allocation2] sm:$0xff]
        %v1413 = vld [vmem:[#allocation2 + $0x8] sm:$0xff]
        %v1414 = vld [vmem:[#allocation2 + $0x10] sm:$0xff]
        %v1415 = vld [vmem:[#allocation2 + $0x18] sm:$0xff]
        %v1416 = vld [vmem:[#allocation2 + $0x20] sm:$0xff]
        %v1417 = vld [vmem:[#allocation2 + $0x28] sm:$0xff]
        %v1418 = vld [vmem:[#allocation2 + $0x30] sm:$0xff]
        %v1419 = vld [vmem:[#allocation2 + $0x38] sm:$0xff]
        %v1420 = vld [vmem:[#allocation2 + $0x40] sm:$0xff]
        %v1421 = vld [vmem:[#allocation2 + $0x48] sm:$0xff]
        %v1422 = vld [vmem:[#allocation2 + $0x50] sm:$0xff]
        %v1423 = vld [vmem:[#allocation2 + $0x58] sm:$0xff]
        %v1424 = vld [vmem:[#allocation2 + $0x60] sm:$0xff]
        %v1425 = vld [vmem:[#allocation2 + $0x68] sm:$0xff]
        %v1426 = vld [vmem:[#allocation2 + $0x70] sm:$0xff]
        %v1427 = vld [vmem:[#allocation2 + $0x78] sm:$0xff]
        %v1428 = vld [vmem:[#allocation2 + $0x80] sm:$0xff]
        %v1429 = vld [vmem:[#allocation2 + $0x88] sm:$0xff]
        %v1430 = vpack.c.bf16 %v1414, %v1412
        %v1431 = vpack.c.bf16 %v1415, %v1413
        %v1432 = vpack.c.bf16 %v1418, %v1416
        %v1433 = vpack.c.bf16 %v1419, %v1417
        %v1434 = vpack.c.bf16 %v1422, %v1420
        %v1435 = vpack.c.bf16 %v1423, %v1421
        %v1436 = vpack.c.bf16 %v1426, %v1424
        %v1437 = vpack.c.bf16 %v1427, %v1425
        %v1438 = vpack.c.bf16 %v1428, %v1428
        %v1439 = vpack.c.bf16 %v1429, %v1429
        %v1440 = vld [vmem:[%s8] sm:$0xf]
        %v1441 = vld [vmem:[%s9] sm:$0xff]
        %1443 = vset.pattern.permute.xlu0 0
        %1444 = vperm.xlu0 %1443, %v1441
        %v1445 = vpop.permute.xlu0 %1444
        %vm1447 = vcmask 588800
        %v1449 = vsel %vm1447, %v1440, 0
        %vm1451 = vcmask 1043456
        %v1453 = vsel %vm1451, %v1438, 0
        %v1456 = vsel %vm1451, %v1439, 0
        %1458 = vmatprep.subr.bf16.mxu0 %v1431
        %1459 = vmatpush1.bf16.msra.mxu0 %v1430
        %1460 = vmatprep.subr.bf16.mxu0 %v1433
        %1461 = vmatpush1.bf16.msra.mxu0 %v1432
        %1462 = vmatprep.subr.bf16.mxu0 %v1435
        %1463 = vmatpush1.bf16.msra.mxu0 %v1434
        %1464 = vmatprep.subr.bf16.mxu0 %v1437
        %1465 = vmatpush1.bf16.msra.mxu0 %v1436
        %1466 = vmatprep.subr.bf16.mxu0 %v1456
        %1467 = vmatpush1.bf16.msra.mxu0 %v1453
        %1468 = vmatprep.subr.bf16.mxu0 0
        %1469 = vmatpush1.bf16.msra.mxu0 0
        %1470 = vmatprep.subr.bf16.mxu0 0
        %1471 = vmatpush1.bf16.msra.mxu0 0
        %1472 = vmatprep.subr.bf16.mxu0 0
        %1473 = vmatpush1.bf16.msra.mxu0 0
        %1474 = vmatprep.subr.bf16.mxu0 0
        %1475 = vmatpush1.bf16.msra.mxu0 0
        %1476 = vmatprep.subr.bf16.mxu0 0
        %1477 = vmatpush1.bf16.msra.mxu0 0
        %1478 = vmatprep.subr.bf16.mxu0 0
        %1479 = vmatpush1.bf16.msra.mxu0 0
        %1480 = vmatprep.subr.bf16.mxu0 0
        %1481 = vmatpush1.bf16.msra.mxu0 0
        %1482 = vmatprep.subr.bf16.mxu0 0
        %1483 = vmatpush1.bf16.msra.mxu0 0
        %1484 = vmatprep.subr.bf16.mxu0 0
        %1485 = vmatpush1.bf16.msra.mxu0 0
        %1486 = vmatprep.subr.bf16.mxu0 0
        %1487 = vmatpush1.bf16.msra.mxu0 0
        %1488 = vmatprep.subr.bf16.mxu0 0
        %1489 = vmatpush1.bf16.msra.mxu0 0
        %1490 = vmatprep.mubr.bf16.mxu0 0
        %1491 = vmatmul.mubr.bf16.gmra.mrb[0].mxu0 %v1449
        %v1492 = vpop.f32.mrb[0].mxu0
        %v1493 = vadd.f32 %v1445, %v1492
        %v1494 = vpop.f32.mrb[0].mxu0
        %v1495 = vadd.f32 %v1445, %v1494
        %v1496 = vpop.f32.mrb[0].mxu0
        %v1497 = vpop.f32.mrb[0].mxu0
        %1498 = vdwg.mxu0
        %v1499 = vmax.f32 %v1493, 0.0
        %v1500 = vmax.f32 %v1495, 0.0
        %1501 = vst [vmem:[%s368] sm:$0xff] %v1499
        %1502 = vst [vmem:[%s368 + $0x8] sm:$0xff] %v1500
        %s1503 = sand.u32 %s248, 1
        %s1504 = scalar_lea.sflag [#allocation5], %s1503
        %s1505 = sand.u32 %s248, 1
        %s1506 = smul.addr %s1505, 16
        %s1507 = scalar_lea.vmem [#allocation6], %s1506
        // Predicated region
        $region65: #{tpu_custom_call.1} parent=59 // pred_check
          %p1508 = pneg %p258
        $region66: #{tpu_custom_call.1} parent=59 // pred_check_branch
          %1510 = sbr.rel (%p1508) target = $region68
        $region67: #{tpu_custom_call.1} parent=59 // pred_region
          %s1511 = smul.u32 2, %s25
          %s1513 = ssub.s32 256, 256
          %1514 = vsyncadd %s1504, %s1513
          %s1515 = smul.addr %s1511, 128
          %s1516 = scalar_lea.hbm %s10, %s1515
          %s1518 = sshll.u32 %s1507, 4
          %s1519 = int_to_ptr.vmem [resolvable:$true] %s1518
          %1521 = dma.vmem_to_hbm [thread:$0]  %s1519, 256, %s1516, %s1504
        $region68: #{tpu_custom_call.1} parent=59 // pred_fallthru
          _
      $region60: #{tpu_custom_call.1} parent=5 // pred_fallthru
        _
      %p1522 = scmp.le.s32.totalorder 2, %s20
      // Predicated region
      $region69: #{tpu_custom_call.1} parent=5 // pred_check
        %p1523 = pneg %p1522
      $region70: #{tpu_custom_call.1} parent=5 // pred_check_branch
        %1525 = sbr.rel (%p1523) target = $region72
      $region71: #{tpu_custom_call.1} parent=5 // pred_region
        %s1526 = ssub.s32 %s20, 2
        // Predicated region
        $region73: #{tpu_custom_call.1} parent=71 // pred_check
          %p1527 = pneg %p264
        $region74: #{tpu_custom_call.1} parent=71 // pred_check_branch
          %1529 = sbr.rel (%p1527) target = $region76
        $region75: #{tpu_custom_call.1} parent=71 // pred_region
          %s1530 = sand.u32 %s249, 1
          %s1531 = scalar_lea.sflag [#allocation5], %s1530
          %s1532 = sand.u32 %s249, 1
          %s1533 = smul.addr %s1532, 16
          %s1534 = scalar_lea.vmem [#allocation6], %s1533
          %1535 = dma.done %s1531, 256
        $region76: #{tpu_custom_call.1} parent=71 // pred_fallthru
          _
      $region72: #{tpu_custom_call.1} parent=5 // pred_fallthru
        _
    $region6: #{tpu_custom_call.1} parent=1 // loop_footer
      %s24 = sadd.s32 1, %s20
    $region7: #{tpu_custom_call.1} parent=1 // loop_footer_branch
      %19 = sbr.rel target = $region3
    $region8: #{tpu_custom_call.1} parent=1 // loop_exit
      _
    %1536 = vsyncpa [#allocation4], 1
    %s1537 = scalar_lea.sflag [#allocation4], 1
    %1538 = vsyncpa %s1537, 1
    %1539 = vsyncpa [#allocation5], 1
    %s1540 = scalar_lea.sflag [#allocation5], 1
    %1541 = vsyncpa %s1540, 1

</llo_original>
